<compile_context>
chip_gen: v5e
topology: v5e:2x2
jax: 0.10.0
libtpu: 0.0.40
codegen_flags: <defaults>
</compile_context>

<pallas_src>
import functools

import jax
import jax.numpy as jnp
from jax.experimental import pallas as pl
from jax.experimental.pallas import tpu as pltpu


def _make_kernel(dropout_p: float, training: bool, vocab: int, t_max: int,
                 tile_t: int):
    use_dropout = training and dropout_p > 0.0

    def kernel(ids_ref, pos_ref, emb_ref, pe_ref, *rest):
        if use_dropout:
            rand_ref, out_ref = rest
        else:
            (out_ref,) = rest

        ids = ids_ref[...]                      # (TILE_T, 1) int32 token ids
        pos = pos_ref[...]                      # (TILE_T, 1) int32 positions

        # --- Embedding gather: one-hot (TILE_T, V) @ (V, D) on the MXU. ---
        v_iota = jax.lax.broadcasted_iota(jnp.int32, (tile_t, vocab), 1)
        onehot_v = (ids == v_iota).astype(jnp.float32)
        emb_rows = jnp.dot(onehot_v, emb_ref[...],
                           precision=jax.lax.Precision.HIGHEST,
                           preferred_element_type=jnp.float32)

        # --- Position-encoding gather: one-hot (TILE_T, T_max) @ (T_max, D). ---
        t_iota = jax.lax.broadcasted_iota(jnp.int32, (tile_t, t_max), 1)
        onehot_t = (pos == t_iota).astype(jnp.float32)
        pe_rows = jnp.dot(onehot_t, pe_ref[...],
                          precision=jax.lax.Precision.HIGHEST,
                          preferred_element_type=jnp.float32)

        val = emb_rows + pe_rows                # (TILE_T, D)

        if use_dropout:
            # TODO(synk): matches torch.nn.Dropout distribution/scaling but
            # not PyTorch's RNG stream bit-for-bit (impossible to match).
            keep = rand_ref[...] >= jnp.float32(dropout_p)
            scale = jnp.float32(1.0 / (1.0 - dropout_p))
            val = jnp.where(keep, val * scale, jnp.float32(0.0))

        out_ref[...] = val.astype(out_ref.dtype)

    return kernel


def make_position_encoding(max_seq_len: int, pe_dim: int) -> jnp.ndarray:
    """Same formula as the PyTorch PositionEncoding.__init__ loop."""
    assert pe_dim % 2 == 0
    d = pe_dim // 2
    k = jnp.arange(max_seq_len, dtype=jnp.float32)[:, None]      # [T_max, 1]
    i = jnp.arange(d, dtype=jnp.float32)[None, :]                 # [1, d]
    g = k / (10000.0 ** (2.0 * i / pe_dim))                       # [T_max, d]
    return jnp.concatenate([jnp.sin(g), jnp.cos(g)], axis=1)      # [T_max, pe_dim]


@functools.partial(jax.jit,
                   static_argnames=("dropout_p", "training", "tile_t"))
def input_layer_forward(ids, emb_table, pe, dropout_key=None, *,
                        dropout_p: float = 0.2, training: bool = False,
                        tile_t: int = 128):
    B, T = ids.shape
    V, D = emb_table.shape
    T_max = pe.shape[0]
    assert pe.shape[1] == D and T <= T_max
    assert 0.0 <= dropout_p < 1.0, "dropout_p must be in [0, 1)"

    use_dropout = training and dropout_p > 0.0

    # Flatten (B, T) -> token axis, pad up to a multiple of the token tile so
    # every grid step produces a dense (tile_t, D) block.
    N = B * T
    n_tiles = pl.cdiv(N, tile_t)
    N_pad = n_tiles * tile_t

    ids_flat = ids.reshape(N).astype(jnp.int32)
    pos_flat = (jnp.arange(N, dtype=jnp.int32) % T)
    if N_pad != N:
        pad = N_pad - N
        ids_flat = jnp.pad(ids_flat, (0, pad))   # id 0 / pos 0 are valid rows
        pos_flat = jnp.pad(pos_flat, (0, pad))
    ids_col = ids_flat.reshape(N_pad, 1)
    pos_col = pos_flat.reshape(N_pad, 1)

    in_specs = [
        pl.BlockSpec((tile_t, 1), lambda i: (i, 0)),   # token ids tile
        pl.BlockSpec((tile_t, 1), lambda i: (i, 0)),   # positions tile
        pl.BlockSpec((V, D), lambda i: (0, 0)),        # resident embedding table
        pl.BlockSpec((T_max, D), lambda i: (0, 0)),    # resident PE table
    ]
    inputs = [ids_col, pos_col, emb_table, pe]

    if use_dropout:
        rand = jax.random.uniform(dropout_key, (N_pad, D), dtype=jnp.float32)
        in_specs.append(pl.BlockSpec((tile_t, D), lambda i: (i, 0)))
        inputs.append(rand)

    kernel = _make_kernel(dropout_p, training, V, T_max, tile_t)

    out_flat = pl.pallas_call(
        kernel,
        out_shape=jax.ShapeDtypeStruct((N_pad, D), jnp.float32),
        grid=(n_tiles,),
        in_specs=in_specs,
        out_specs=pl.BlockSpec((tile_t, D), lambda i: (i, 0)),
        compiler_params=pltpu.CompilerParams(
            dimension_semantics=("parallel",)),
    )(*inputs)

    return out_flat[:N].reshape(B, T, D)


if __name__ == "__main__":
    # Small, InputLayer-consistent shapes.
    input_dim = 64        # vocab size
    model_dim = 128       # embedding / PE dim (lane-dense)
    max_seq_len = 16
    B, T = 2, 8

    key = jax.random.PRNGKey(0)
    k_emb, k_ids, k_drop = jax.random.split(key, 3)

    # nn.Embedding default init: N(0, 1).
    emb_table = jax.random.normal(k_emb, (input_dim, model_dim),
                                  dtype=jnp.float32)
    pe = make_position_encoding(max_seq_len, model_dim)
    ids = jax.random.randint(k_ids, (B, T), 0, input_dim, dtype=jnp.int32)

    # Eval mode (dropout = identity): deterministic, check vs pure-JAX ref.
    out_eval = input_layer_forward(ids, emb_table, pe, None,
                                   dropout_p=0.2, training=False)
    jax.block_until_ready(out_eval)
    ref = emb_table[ids] + pe[:T][None, :, :]
    assert out_eval.shape == (B, T, model_dim)
    assert jnp.allclose(out_eval, ref, atol=1e-5, rtol=1e-5), \
        "mismatch vs reference"

    # Training mode: stochastic dropout (mask/scale applied inside the kernel).
    p = 0.2
    out_train = input_layer_forward(ids, emb_table, pe, k_drop,
                                    dropout_p=p, training=True)
    jax.block_until_ready(out_train)
    assert out_train.shape == (B, T, model_dim)
    # Dropped entries are exactly zero, kept entries equal ref / (1 - p).
    kept = out_train != 0
    assert jnp.allclose(jnp.where(kept, out_train, 0.0),
                        jnp.where(kept, ref / (1.0 - p), 0.0),
                        atol=1e-4, rtol=1e-4)

    print("KERNEL_OK")
</pallas_src>

<mosaic_0001>
module attributes {stable_mosaic.version = 11 : i64} {
  func.func @kernel(%arg0: i32, %arg1: memref<128x1xi32, #tpu.memory_space<vmem>>, %arg2: memref<128x1xi32, #tpu.memory_space<vmem>>, %arg3: memref<64x128xf32, #tpu.memory_space<vmem>>, %arg4: memref<16x128xf32, #tpu.memory_space<vmem>>, %arg5: memref<128x128xf32, #tpu.memory_space<vmem>>) attributes {dimension_semantics = [#tpu.dimension_semantics<parallel>], iteration_bounds = array<i64: 1>, scalar_prefetch = 0 : i64, scratch_operands = 0 : i64, tpu.core_type = #tpu.core_type<tc>, window_params = [{transform_indices = @transform_0, window_bounds = array<i64: 128, 1>}, {transform_indices = @transform_1, window_bounds = array<i64: 128, 1>}, {pipeline_mode = #tpu.pipeline_mode<synchronous>, transform_indices = @transform_2, window_bounds = array<i64: 64, 128>}, {pipeline_mode = #tpu.pipeline_mode<synchronous>, transform_indices = @transform_3, window_bounds = array<i64: 16, 128>}, {transform_indices = @transform_4, window_bounds = array<i64: 128, 128>}]} {
    %c0 = arith.constant 0 : index
    %c0_0 = arith.constant 0 : index
    %0 = vector.load %arg1[%c0, %c0_0] : memref<128x1xi32, #tpu.memory_space<vmem>>, vector<128x1xi32>
    %c0_1 = arith.constant 0 : index
    %c0_2 = arith.constant 0 : index
    %1 = vector.load %arg2[%c0_1, %c0_2] : memref<128x1xi32, #tpu.memory_space<vmem>>, vector<128x1xi32>
    %2 = tpu.iota {dimensions = array<i32: 1>} : vector<128x64xi32>
    %3 = vector.broadcast %0 : vector<128x1xi32> to vector<128x64xi32>
    %4 = arith.cmpi eq, %3, %2 : vector<128x64xi32>
    %5 = arith.extui %4 : vector<128x64xi1> to vector<128x64xi32>
    %6 = arith.sitofp %5 : vector<128x64xi32> to vector<128x64xf32>
    %c0_3 = arith.constant 0 : index
    %c0_4 = arith.constant 0 : index
    %7 = vector.load %arg3[%c0_3, %c0_4] : memref<64x128xf32, #tpu.memory_space<vmem>>, vector<64x128xf32>
    %cst = arith.constant dense<0.000000e+00> : vector<128x128xf32>
    %8 = tpu.matmul %6, %7, %cst {dimension_numbers = #tpu.dot_dimension_numbers<[1], [0], [0], [1], [0, 0, 1, 1], [], []>, precision = #tpu.contract_precision<fp32>} : vector<128x64xf32>, vector<64x128xf32>, vector<128x128xf32> -> vector<128x128xf32>
    %9 = tpu.iota {dimensions = array<i32: 1>} : vector<128x16xi32>
    %10 = vector.broadcast %1 : vector<128x1xi32> to vector<128x16xi32>
    %11 = arith.cmpi eq, %10, %9 : vector<128x16xi32>
    %12 = arith.extui %11 : vector<128x16xi1> to vector<128x16xi32>
    %13 = arith.sitofp %12 : vector<128x16xi32> to vector<128x16xf32>
    %c0_5 = arith.constant 0 : index
    %c0_6 = arith.constant 0 : index
    %14 = vector.load %arg4[%c0_5, %c0_6] : memref<16x128xf32, #tpu.memory_space<vmem>>, vector<16x128xf32>
    %cst_7 = arith.constant dense<0.000000e+00> : vector<128x128xf32>
    %15 = tpu.matmul %13, %14, %cst_7 {dimension_numbers = #tpu.dot_dimension_numbers<[1], [0], [0], [1], [0, 0, 1, 1], [], []>, precision = #tpu.contract_precision<fp32>} : vector<128x16xf32>, vector<16x128xf32>, vector<128x128xf32> -> vector<128x128xf32>
    %16 = arith.addf %8, %15 : vector<128x128xf32>
    %c0_8 = arith.constant 0 : index
    %c0_9 = arith.constant 0 : index
    %17 = vector.load %arg5[%c0_8, %c0_9] : memref<128x128xf32, #tpu.memory_space<vmem>>, vector<128x128xf32>
    tpu.vector_store %arg5[%c0_8, %c0_9], %16 {strides = array<i32>} : memref<128x128xf32, #tpu.memory_space<vmem>>, vector<128x128xf32>,
    return
  }
  func.func @transform_0(%arg0: i32) -> (i32, i32) {
    %c0_i32 = arith.constant 0 : i32
    %c0_i32_0 = arith.constant 0 : i32
    return %arg0, %c0_i32 : i32, i32
  }
  func.func @transform_1(%arg0: i32) -> (i32, i32) {
    %c0_i32 = arith.constant 0 : i32
    %c0_i32_0 = arith.constant 0 : i32
    return %arg0, %c0_i32 : i32, i32
  }
  func.func @transform_2(%arg0: i32) -> (i32, i32) {
    %c0_i32 = arith.constant 0 : i32
    %c0_i32_0 = arith.constant 0 : i32
    %c0_i32_1 = arith.constant 0 : i32
    return %c0_i32, %c0_i32_0 : i32, i32
  }
  func.func @transform_3(%arg0: i32) -> (i32, i32) {
    %c0_i32 = arith.constant 0 : i32
    %c0_i32_0 = arith.constant 0 : i32
    %c0_i32_1 = arith.constant 0 : i32
    return %c0_i32, %c0_i32_0 : i32, i32
  }
  func.func @transform_4(%arg0: i32) -> (i32, i32) {
    %c0_i32 = arith.constant 0 : i32
    %c0_i32_0 = arith.constant 0 : i32
    return %arg0, %c0_i32 : i32, i32
  }
}

</mosaic_0001>

<llo_original>
// kernel: input_layer_forward.1
$region0: #{input_layer_forward.1}
  #allocation0 [shape = 'u32[]', space=smem, size = 0x4, offset = 0x4, fixed_abs, tag = 'smem constant byte address 0x4 - core index']
  #allocation1 [shape = 'u32[72,128]{1,0:T(1,128)}', space=vmem, size = 0x9000, scoped, tag = 'internal scratch']
  %s0 = inlined_call_operand.vmem [shape: s32[128,1], index: 0, kind: input, shape index: {}]
  %s1 = inlined_call_operand.vmem [shape: s32[128,1], index: 1, kind: input, shape index: {}]
  %s2 = inlined_call_operand.vmem [shape: f32[64,128], index: 2, kind: input, shape index: {}]
  %s3 = inlined_call_operand.vmem [shape: f32[16,128], index: 3, kind: input, shape index: {}]
  %s4 = inlined_call_operand.vmem [shape: f32[128,128], index: 4, kind: output, shape index: {}]
  %s5 = sld [smem:[#allocation0]]
  $region26: #{input_layer_forward.1} parent=0
    _
  %s7 = ssub.s32 1, %s5
  %s8 = scalar_select 0, %s7, %s5
  // Predicated region
  $region2: #{input_layer_forward.1} parent=0 // pred_check
    _
  $region3: #{input_layer_forward.1} parent=0 // pred_check_branch
    %10 = sbr.rel (0) target = $region5
  $region4: #{input_layer_forward.1} parent=0 // pred_region
    _
  $region5: #{input_layer_forward.1} parent=0 // pred_fallthru
    _
  // Predicated region
  $region6: #{input_layer_forward.1} parent=0 // pred_check
    _
  $region7: #{input_layer_forward.1} parent=0 // pred_check_branch
    %12 = sbr.rel (0) target = $region9
  $region8: #{input_layer_forward.1} parent=0 // pred_region
    _
  $region9: #{input_layer_forward.1} parent=0 // pred_fallthru
    _
  // Predicated region
  $region10: #{input_layer_forward.1} parent=0 // pred_check
    _
  $region11: #{input_layer_forward.1} parent=0 // pred_check_branch
    %14 = sbr.rel (0) target = $region13
  $region12: #{input_layer_forward.1} parent=0 // pred_region
    _
  $region13: #{input_layer_forward.1} parent=0 // pred_fallthru
    _
  // Predicated region
  $region14: #{input_layer_forward.1} parent=0 // pred_check
    _
  $region15: #{input_layer_forward.1} parent=0 // pred_check_branch
    %16 = sbr.rel (0) target = $region17
  $region16: #{input_layer_forward.1} parent=0 // pred_region
    _
  $region17: #{input_layer_forward.1} parent=0 // pred_fallthru
    _
  %v17 = vld [vmem:[%s0] sm:$0xff]
  %v18 = vld [vmem:[%s0 + $0x8] sm:$0xff]
  %v19 = vld [vmem:[%s0 + $0x10] sm:$0xff]
  %v20 = vld [vmem:[%s0 + $0x18] sm:$0xff]
  %v21 = vld [vmem:[%s0 + $0x20] sm:$0xff]
  %v22 = vld [vmem:[%s0 + $0x28] sm:$0xff]
  %v23 = vld [vmem:[%s0 + $0x30] sm:$0xff]
  %v24 = vld [vmem:[%s0 + $0x38] sm:$0xff]
  %v25 = vld [vmem:[%s0 + $0x40] sm:$0xff]
  %v26 = vld [vmem:[%s0 + $0x48] sm:$0xff]
  %v27 = vld [vmem:[%s0 + $0x50] sm:$0xff]
  %v28 = vld [vmem:[%s0 + $0x58] sm:$0xff]
  %v29 = vld [vmem:[%s0 + $0x60] sm:$0xff]
  %v30 = vld [vmem:[%s0 + $0x68] sm:$0xff]
  %v31 = vld [vmem:[%s0 + $0x70] sm:$0xff]
  %v32 = vld [vmem:[%s0 + $0x78] sm:$0xff]
  %v33 = vld [vmem:[%s1] sm:$0xff]
  %v34 = vld [vmem:[%s1 + $0x8] sm:$0xff]
  %v35 = vld [vmem:[%s1 + $0x10] sm:$0xff]
  %v36 = vld [vmem:[%s1 + $0x18] sm:$0xff]
  %v37 = vld [vmem:[%s1 + $0x20] sm:$0xff]
  %v38 = vld [vmem:[%s1 + $0x28] sm:$0xff]
  %v39 = vld [vmem:[%s1 + $0x30] sm:$0xff]
  %v40 = vld [vmem:[%s1 + $0x38] sm:$0xff]
  %v41 = vld [vmem:[%s1 + $0x40] sm:$0xff]
  %v42 = vld [vmem:[%s1 + $0x48] sm:$0xff]
  %v43 = vld [vmem:[%s1 + $0x50] sm:$0xff]
  %v44 = vld [vmem:[%s1 + $0x58] sm:$0xff]
  %v45 = vld [vmem:[%s1 + $0x60] sm:$0xff]
  %v46 = vld [vmem:[%s1 + $0x68] sm:$0xff]
  %v47 = vld [vmem:[%s1 + $0x70] sm:$0xff]
  %v48 = vld [vmem:[%s1 + $0x78] sm:$0xff]
  %v49 = vlaneseq
  %v50 = vand.u32 %v49, 127
  %51 = vset.pattern.permute.xlu0 0
  %52 = vperm.xlu0 %51, %v17
  %v53 = vpop.permute.xlu0 %52
  %54 = vset.pattern.permute.xlu0 0
  %55 = vperm.xlu0 %54, %v18
  %v56 = vpop.permute.xlu0 %55
  %57 = vset.pattern.permute.xlu0 0
  %58 = vperm.xlu0 %57, %v19
  %v59 = vpop.permute.xlu0 %58
  %60 = vset.pattern.permute.xlu0 0
  %61 = vperm.xlu0 %60, %v20
  %v62 = vpop.permute.xlu0 %61
  %63 = vset.pattern.permute.xlu0 0
  %64 = vperm.xlu0 %63, %v21
  %v65 = vpop.permute.xlu0 %64
  %66 = vset.pattern.permute.xlu0 0
  %67 = vperm.xlu0 %66, %v22
  %v68 = vpop.permute.xlu0 %67
  %69 = vset.pattern.permute.xlu0 0
  %70 = vperm.xlu0 %69, %v23
  %v71 = vpop.permute.xlu0 %70
  %72 = vset.pattern.permute.xlu0 0
  %73 = vperm.xlu0 %72, %v24
  %v74 = vpop.permute.xlu0 %73
  %75 = vset.pattern.permute.xlu0 0
  %76 = vperm.xlu0 %75, %v25
  %v77 = vpop.permute.xlu0 %76
  %78 = vset.pattern.permute.xlu0 0
  %79 = vperm.xlu0 %78, %v26
  %v80 = vpop.permute.xlu0 %79
  %81 = vset.pattern.permute.xlu0 0
  %82 = vperm.xlu0 %81, %v27
  %v83 = vpop.permute.xlu0 %82
  %84 = vset.pattern.permute.xlu0 0
  %85 = vperm.xlu0 %84, %v28
  %v86 = vpop.permute.xlu0 %85
  %87 = vset.pattern.permute.xlu0 0
  %88 = vperm.xlu0 %87, %v29
  %v89 = vpop.permute.xlu0 %88
  %90 = vset.pattern.permute.xlu0 0
  %91 = vperm.xlu0 %90, %v30
  %v92 = vpop.permute.xlu0 %91
  %93 = vset.pattern.permute.xlu0 0
  %94 = vperm.xlu0 %93, %v31
  %v95 = vpop.permute.xlu0 %94
  %96 = vset.pattern.permute.xlu0 0
  %97 = vperm.xlu0 %96, %v32
  %v98 = vpop.permute.xlu0 %97
  %vm99 = vcmp.eq.s32.totalorder %v53, %v50
  %vm100 = vcmp.eq.s32.totalorder %v56, %v50
  %vm101 = vcmp.eq.s32.totalorder %v59, %v50
  %vm102 = vcmp.eq.s32.totalorder %v62, %v50
  %vm103 = vcmp.eq.s32.totalorder %v65, %v50
  %vm104 = vcmp.eq.s32.totalorder %v68, %v50
  %vm105 = vcmp.eq.s32.totalorder %v71, %v50
  %vm106 = vcmp.eq.s32.totalorder %v74, %v50
  %vm107 = vcmp.eq.s32.totalorder %v77, %v50
  %vm108 = vcmp.eq.s32.totalorder %v80, %v50
  %vm109 = vcmp.eq.s32.totalorder %v83, %v50
  %vm110 = vcmp.eq.s32.totalorder %v86, %v50
  %vm111 = vcmp.eq.s32.totalorder %v89, %v50
  %vm112 = vcmp.eq.s32.totalorder %v92, %v50
  %vm113 = vcmp.eq.s32.totalorder %v95, %v50
  %vm114 = vcmp.eq.s32.totalorder %v98, %v50
  %v115 = vsel %vm99, 1, 0
  %v116 = vsel %vm100, 1, 0
  %v117 = vsel %vm101, 1, 0
  %v118 = vsel %vm102, 1, 0
  %v119 = vsel %vm103, 1, 0
  %v120 = vsel %vm104, 1, 0
  %v121 = vsel %vm105, 1, 0
  %v122 = vsel %vm106, 1, 0
  %v123 = vsel %vm107, 1, 0
  %v124 = vsel %vm108, 1, 0
  %v125 = vsel %vm109, 1, 0
  %v126 = vsel %vm110, 1, 0
  %v127 = vsel %vm111, 1, 0
  %v128 = vsel %vm112, 1, 0
  %v129 = vsel %vm113, 1, 0
  %v130 = vsel %vm114, 1, 0
  %v131 = vcvt.s32.f32 %v115
  %v132 = vcvt.s32.f32 %v116
  %v133 = vcvt.s32.f32 %v117
  %v134 = vcvt.s32.f32 %v118
  %v135 = vcvt.s32.f32 %v119
  %v136 = vcvt.s32.f32 %v120
  %v137 = vcvt.s32.f32 %v121
  %v138 = vcvt.s32.f32 %v122
  %v139 = vcvt.s32.f32 %v123
  %v140 = vcvt.s32.f32 %v124
  %v141 = vcvt.s32.f32 %v125
  %v142 = vcvt.s32.f32 %v126
  %v143 = vcvt.s32.f32 %v127
  %v144 = vcvt.s32.f32 %v128
  %v145 = vcvt.s32.f32 %v129
  %v146 = vcvt.s32.f32 %v130
  %v147 = vld [vmem:[%s2] sm:$0xff]
  %v148 = vld [vmem:[%s2 + $0x8] sm:$0xff]
  %v149 = vld [vmem:[%s2 + $0x10] sm:$0xff]
  %v150 = vld [vmem:[%s2 + $0x18] sm:$0xff]
  %v151 = vld [vmem:[%s2 + $0x20] sm:$0xff]
  %v152 = vld [vmem:[%s2 + $0x28] sm:$0xff]
  %v153 = vld [vmem:[%s2 + $0x30] sm:$0xff]
  %v154 = vld [vmem:[%s2 + $0x38] sm:$0xff]
  %155 = vset.pattern.permute.xlu0 0
  %156 = vperm.xlu0 %155, %v33
  %v157 = vpop.permute.xlu0 %156
  %158 = vset.pattern.permute.xlu0 0
  %159 = vperm.xlu0 %158, %v34
  %v160 = vpop.permute.xlu0 %159
  %161 = vset.pattern.permute.xlu0 0
  %162 = vperm.xlu0 %161, %v35
  %v163 = vpop.permute.xlu0 %162
  %164 = vset.pattern.permute.xlu0 0
  %165 = vperm.xlu0 %164, %v36
  %v166 = vpop.permute.xlu0 %165
  %167 = vset.pattern.permute.xlu0 0
  %168 = vperm.xlu0 %167, %v37
  %v169 = vpop.permute.xlu0 %168
  %170 = vset.pattern.permute.xlu0 0
  %171 = vperm.xlu0 %170, %v38
  %v172 = vpop.permute.xlu0 %171
  %173 = vset.pattern.permute.xlu0 0
  %174 = vperm.xlu0 %173, %v39
  %v175 = vpop.permute.xlu0 %174
  %176 = vset.pattern.permute.xlu0 0
  %177 = vperm.xlu0 %176, %v40
  %v178 = vpop.permute.xlu0 %177
  %179 = vset.pattern.permute.xlu0 0
  %180 = vperm.xlu0 %179, %v41
  %v181 = vpop.permute.xlu0 %180
  %182 = vset.pattern.permute.xlu0 0
  %183 = vperm.xlu0 %182, %v42
  %v184 = vpop.permute.xlu0 %183
  %185 = vset.pattern.permute.xlu0 0
  %186 = vperm.xlu0 %185, %v43
  %v187 = vpop.permute.xlu0 %186
  %188 = vset.pattern.permute.xlu0 0
  %189 = vperm.xlu0 %188, %v44
  %v190 = vpop.permute.xlu0 %189
  %191 = vset.pattern.permute.xlu0 0
  %192 = vperm.xlu0 %191, %v45
  %v193 = vpop.permute.xlu0 %192
  %194 = vset.pattern.permute.xlu0 0
  %195 = vperm.xlu0 %194, %v46
  %v196 = vpop.permute.xlu0 %195
  %197 = vset.pattern.permute.xlu0 0
  %198 = vperm.xlu0 %197, %v47
  %v199 = vpop.permute.xlu0 %198
  %200 = vset.pattern.permute.xlu0 0
  %201 = vperm.xlu0 %200, %v48
  %v202 = vpop.permute.xlu0 %201
  %vm203 = vcmp.eq.s32.totalorder %v157, %v50
  %vm204 = vcmp.eq.s32.totalorder %v160, %v50
  %vm205 = vcmp.eq.s32.totalorder %v163, %v50
  %vm206 = vcmp.eq.s32.totalorder %v166, %v50
  %vm207 = vcmp.eq.s32.totalorder %v169, %v50
  %vm208 = vcmp.eq.s32.totalorder %v172, %v50
  %vm209 = vcmp.eq.s32.totalorder %v175, %v50
  %vm210 = vcmp.eq.s32.totalorder %v178, %v50
  %vm211 = vcmp.eq.s32.totalorder %v181, %v50
  %vm212 = vcmp.eq.s32.totalorder %v184, %v50
  %vm213 = vcmp.eq.s32.totalorder %v187, %v50
  %vm214 = vcmp.eq.s32.totalorder %v190, %v50
  %vm215 = vcmp.eq.s32.totalorder %v193, %v50
  %vm216 = vcmp.eq.s32.totalorder %v196, %v50
  %vm217 = vcmp.eq.s32.totalorder %v199, %v50
  %vm218 = vcmp.eq.s32.totalorder %v202, %v50
  %v219 = vsel %vm203, 1, 0
  %v220 = vsel %vm204, 1, 0
  %v221 = vsel %vm205, 1, 0
  %v222 = vsel %vm206, 1, 0
  %v223 = vsel %vm207, 1, 0
  %v224 = vsel %vm208, 1, 0
  %v225 = vsel %vm209, 1, 0
  %v226 = vsel %vm210, 1, 0
  %v227 = vsel %vm211, 1, 0
  %v228 = vsel %vm212, 1, 0
  %v229 = vsel %vm213, 1, 0
  %v230 = vsel %vm214, 1, 0
  %v231 = vsel %vm215, 1, 0
  %v232 = vsel %vm216, 1, 0
  %v233 = vsel %vm217, 1, 0
  %v234 = vsel %vm218, 1, 0
  %v235 = vcvt.s32.f32 %v219
  %v236 = vcvt.s32.f32 %v220
  %v237 = vcvt.s32.f32 %v221
  %v238 = vcvt.s32.f32 %v222
  %v239 = vcvt.s32.f32 %v223
  %v240 = vcvt.s32.f32 %v224
  %v241 = vcvt.s32.f32 %v225
  %v242 = vcvt.s32.f32 %v226
  %v243 = vcvt.s32.f32 %v227
  %v244 = vcvt.s32.f32 %v228
  %v245 = vcvt.s32.f32 %v229
  %v246 = vcvt.s32.f32 %v230
  %v247 = vcvt.s32.f32 %v231
  %v248 = vcvt.s32.f32 %v232
  %v249 = vcvt.s32.f32 %v233
  %v250 = vcvt.s32.f32 %v234
  %v251 = vld [vmem:[%s3] sm:$0xff]
  %v252 = vld [vmem:[%s3 + $0x8] sm:$0xff]
  %vm253 = vcmask 130048
  %v255 = vsel %vm253, %v235, 0
  %v258 = vsel %vm253, %v236, 0
  %v261 = vsel %vm253, %v237, 0
  %v264 = vsel %vm253, %v238, 0
  %v267 = vsel %vm253, %v239, 0
  %v270 = vsel %vm253, %v240, 0
  %v273 = vsel %vm253, %v241, 0
  %v276 = vsel %vm253, %v242, 0
  %v279 = vsel %vm253, %v243, 0
  %v282 = vsel %vm253, %v244, 0
  %v285 = vsel %vm253, %v245, 0
  %v288 = vsel %vm253, %v246, 0
  %v291 = vsel %vm253, %v247, 0
  %v294 = vsel %vm253, %v248, 0
  %v297 = vsel %vm253, %v249, 0
  %v300 = vsel %vm253, %v250, 0
  %302 = vmatpush.msra.mxu0 0.0
  %303 = vmatpush.msra.mxu0 0.0
  %304 = vmatpush.msra.mxu0 0.0
  %305 = vmatpush.msra.mxu0 0.0
  %306 = vmatpush.msra.mxu0 0.0
  %307 = vmatpush.msra.mxu0 0.0
  %308 = vmatpush.msra.mxu0 0.0
  %309 = vmatpush.msra.mxu0 0.0
  %310 = vmatpush.msra.mxu0 0.0
  %311 = vmatpush.msra.mxu0 0.0
  %312 = vmatpush.msra.mxu0 0.0
  %313 = vmatpush.msra.mxu0 0.0
  %314 = vmatpush.msra.mxu0 0.0
  %315 = vmatpush.msra.mxu0 0.0
  %v316 = vand.u32 %v252, 4294901760
  %317 = vmatpush.msra.mxu0 %v316
  %v318 = vand.u32 %v251, 4294901760
  %319 = vmatpush.msra.mxu0 %v318
  %v320 = vand.u32 %v255, 4294901760
  %v321 = vsub.f32 %v255, %v320
  %v322 = vand.u32 %v321, 4294901760
  %v323 = vsub.f32 %v321, %v322
  %v324 = vand.u32 %v323, 4294901760
  %325 = vmatmul.f32.gmra.mxu0 %v324
  %v326 = vpop.f32.mrf.mxu0
  %v327 = vadd.f32 0.0, %v326
  %v328 = vand.u32 %v258, 4294901760
  %v329 = vsub.f32 %v258, %v328
  %v330 = vand.u32 %v329, 4294901760
  %v331 = vsub.f32 %v329, %v330
  %v332 = vand.u32 %v331, 4294901760
  %333 = vmatmul.f32.gmra.mxu0 %v332
  %v334 = vpop.f32.mrf.mxu0
  %v335 = vadd.f32 0.0, %v334
  %v336 = vand.u32 %v261, 4294901760
  %v337 = vsub.f32 %v261, %v336
  %v338 = vand.u32 %v337, 4294901760
  %v339 = vsub.f32 %v337, %v338
  %v340 = vand.u32 %v339, 4294901760
  %341 = vmatmul.f32.gmra.mxu0 %v340
  %v342 = vpop.f32.mrf.mxu0
  %v343 = vadd.f32 0.0, %v342
  %v344 = vand.u32 %v264, 4294901760
  %v345 = vsub.f32 %v264, %v344
  %v346 = vand.u32 %v345, 4294901760
  %v347 = vsub.f32 %v345, %v346
  %v348 = vand.u32 %v347, 4294901760
  %349 = vmatmul.f32.gmra.mxu0 %v348
  %v350 = vpop.f32.mrf.mxu0
  %v351 = vadd.f32 0.0, %v350
  %v352 = vand.u32 %v267, 4294901760
  %v353 = vsub.f32 %v267, %v352
  %v354 = vand.u32 %v353, 4294901760
  %v355 = vsub.f32 %v353, %v354
  %v356 = vand.u32 %v355, 4294901760
  %357 = vmatmul.f32.gmra.mxu0 %v356
  %v358 = vpop.f32.mrf.mxu0
  %v359 = vadd.f32 0.0, %v358
  %v360 = vand.u32 %v270, 4294901760
  %v361 = vsub.f32 %v270, %v360
  %v362 = vand.u32 %v361, 4294901760
  %v363 = vsub.f32 %v361, %v362
  %v364 = vand.u32 %v363, 4294901760
  %365 = vmatmul.f32.gmra.mxu0 %v364
  %v366 = vpop.f32.mrf.mxu0
  %v367 = vadd.f32 0.0, %v366
  %v368 = vand.u32 %v273, 4294901760
  %v369 = vsub.f32 %v273, %v368
  %v370 = vand.u32 %v369, 4294901760
  %v371 = vsub.f32 %v369, %v370
  %v372 = vand.u32 %v371, 4294901760
  %373 = vmatmul.f32.gmra.mxu0 %v372
  %v374 = vpop.f32.mrf.mxu0
  %v375 = vadd.f32 0.0, %v374
  %v376 = vand.u32 %v276, 4294901760
  %v377 = vsub.f32 %v276, %v376
  %v378 = vand.u32 %v377, 4294901760
  %v379 = vsub.f32 %v377, %v378
  %v380 = vand.u32 %v379, 4294901760
  %381 = vmatmul.f32.gmra.mxu0 %v380
  %v382 = vpop.f32.mrf.mxu0
  %v383 = vadd.f32 0.0, %v382
  %v384 = vand.u32 %v279, 4294901760
  %v385 = vsub.f32 %v279, %v384
  %v386 = vand.u32 %v385, 4294901760
  %v387 = vsub.f32 %v385, %v386
  %v388 = vand.u32 %v387, 4294901760
  %389 = vmatmul.f32.gmra.mxu0 %v388
  %v390 = vpop.f32.mrf.mxu0
  %v391 = vadd.f32 0.0, %v390
  %v392 = vand.u32 %v282, 4294901760
  %v393 = vsub.f32 %v282, %v392
  %v394 = vand.u32 %v393, 4294901760
  %v395 = vsub.f32 %v393, %v394
  %v396 = vand.u32 %v395, 4294901760
  %397 = vmatmul.f32.gmra.mxu0 %v396
  %v398 = vpop.f32.mrf.mxu0
  %v399 = vadd.f32 0.0, %v398
  %v400 = vand.u32 %v285, 4294901760
  %v401 = vsub.f32 %v285, %v400
  %v402 = vand.u32 %v401, 4294901760
  %v403 = vsub.f32 %v401, %v402
  %v404 = vand.u32 %v403, 4294901760
  %405 = vmatmul.f32.gmra.mxu0 %v404
  %v406 = vpop.f32.mrf.mxu0
  %v407 = vadd.f32 0.0, %v406
  %v408 = vand.u32 %v288, 4294901760
  %v409 = vsub.f32 %v288, %v408
  %v410 = vand.u32 %v409, 4294901760
  %v411 = vsub.f32 %v409, %v410
  %v412 = vand.u32 %v411, 4294901760
  %413 = vmatmul.f32.gmra.mxu0 %v412
  %v414 = vpop.f32.mrf.mxu0
  %v415 = vadd.f32 0.0, %v414
  %v416 = vand.u32 %v291, 4294901760
  %v417 = vsub.f32 %v291, %v416
  %v418 = vand.u32 %v417, 4294901760
  %v419 = vsub.f32 %v417, %v418
  %v420 = vand.u32 %v419, 4294901760
  %421 = vmatmul.f32.gmra.mxu0 %v420
  %v422 = vpop.f32.mrf.mxu0
  %v423 = vadd.f32 0.0, %v422
  %v424 = vand.u32 %v294, 4294901760
  %v425 = vsub.f32 %v294, %v424
  %v426 = vand.u32 %v425, 4294901760
  %v427 = vsub.f32 %v425, %v426
  %v428 = vand.u32 %v427, 4294901760
  %429 = vmatmul.f32.gmra.mxu0 %v428
  %v430 = vpop.f32.mrf.mxu0
  %v431 = vadd.f32 0.0, %v430
  %v432 = vand.u32 %v297, 4294901760
  %v433 = vsub.f32 %v297, %v432
  %v434 = vand.u32 %v433, 4294901760
  %v435 = vsub.f32 %v433, %v434
  %v436 = vand.u32 %v435, 4294901760
  %437 = vmatmul.f32.gmra.mxu0 %v436
  %v438 = vpop.f32.mrf.mxu0
  %v439 = vadd.f32 0.0, %v438
  %v440 = vand.u32 %v300, 4294901760
  %v441 = vsub.f32 %v300, %v440
  %v442 = vand.u32 %v441, 4294901760
  %v443 = vsub.f32 %v441, %v442
  %v444 = vand.u32 %v443, 4294901760
  %445 = vmatmul.f32.gmra.mxu0 %v444
  %v446 = vpop.f32.mrf.mxu0
  %v447 = vadd.f32 0.0, %v446
  %448 = vdwg.mxu0
  %449 = vmatpush.msra.mxu0 0.0
  %450 = vmatpush.msra.mxu0 0.0
  %451 = vmatpush.msra.mxu0 0.0
  %452 = vmatpush.msra.mxu0 0.0
  %453 = vmatpush.msra.mxu0 0.0
  %454 = vmatpush.msra.mxu0 0.0
  %455 = vmatpush.msra.mxu0 0.0
  %456 = vmatpush.msra.mxu0 0.0
  %457 = vmatpush.msra.mxu0 0.0
  %458 = vmatpush.msra.mxu0 0.0
  %459 = vmatpush.msra.mxu0 0.0
  %460 = vmatpush.msra.mxu0 0.0
  %461 = vmatpush.msra.mxu0 0.0
  %462 = vmatpush.msra.mxu0 0.0
  %v463 = vand.u32 %v252, 4294901760
  %v464 = vsub.f32 %v252, %v463
  %v465 = vand.u32 %v464, 4294901760
  %v466 = vsub.f32 %v464, %v465
  %v467 = vand.u32 %v466, 4294901760
  %468 = vmatpush.msra.mxu0 %v467
  %v469 = vand.u32 %v251, 4294901760
  %v470 = vsub.f32 %v251, %v469
  %v471 = vand.u32 %v470, 4294901760
  %v472 = vsub.f32 %v470, %v471
  %v473 = vand.u32 %v472, 4294901760
  %474 = vmatpush.msra.mxu0 %v473
  %v475 = vand.u32 %v255, 4294901760
  %476 = vmatmul.f32.gmra.mxu0 %v475
  %v477 = vpop.f32.mrf.mxu0
  %v478 = vadd.f32 %v327, %v477
  %v479 = vand.u32 %v258, 4294901760
  %480 = vmatmul.f32.gmra.mxu0 %v479
  %v481 = vpop.f32.mrf.mxu0
  %v482 = vadd.f32 %v335, %v481
  %v483 = vand.u32 %v261, 4294901760
  %484 = vmatmul.f32.gmra.mxu0 %v483
  %v485 = vpop.f32.mrf.mxu0
  %v486 = vadd.f32 %v343, %v485
  %v487 = vand.u32 %v264, 4294901760
  %488 = vmatmul.f32.gmra.mxu0 %v487
  %v489 = vpop.f32.mrf.mxu0
  %v490 = vadd.f32 %v351, %v489
  %v491 = vand.u32 %v267, 4294901760
  %492 = vmatmul.f32.gmra.mxu0 %v491
  %v493 = vpop.f32.mrf.mxu0
  %v494 = vadd.f32 %v359, %v493
  %v495 = vand.u32 %v270, 4294901760
  %496 = vmatmul.f32.gmra.mxu0 %v495
  %v497 = vpop.f32.mrf.mxu0
  %v498 = vadd.f32 %v367, %v497
  %v499 = vand.u32 %v273, 4294901760
  %500 = vmatmul.f32.gmra.mxu0 %v499
  %v501 = vpop.f32.mrf.mxu0
  %v502 = vadd.f32 %v375, %v501
  %v503 = vand.u32 %v276, 4294901760
  %504 = vmatmul.f32.gmra.mxu0 %v503
  %v505 = vpop.f32.mrf.mxu0
  %v506 = vadd.f32 %v383, %v505
  %v507 = vand.u32 %v279, 4294901760
  %508 = vmatmul.f32.gmra.mxu0 %v507
  %v509 = vpop.f32.mrf.mxu0
  %v510 = vadd.f32 %v391, %v509
  %v511 = vand.u32 %v282, 4294901760
  %512 = vmatmul.f32.gmra.mxu0 %v511
  %v513 = vpop.f32.mrf.mxu0
  %v514 = vadd.f32 %v399, %v513
  %v515 = vand.u32 %v285, 4294901760
  %516 = vmatmul.f32.gmra.mxu0 %v515
  %v517 = vpop.f32.mrf.mxu0
  %v518 = vadd.f32 %v407, %v517
  %v519 = vand.u32 %v288, 4294901760
  %520 = vmatmul.f32.gmra.mxu0 %v519
  %v521 = vpop.f32.mrf.mxu0
  %v522 = vadd.f32 %v415, %v521
  %v523 = vand.u32 %v291, 4294901760
  %524 = vmatmul.f32.gmra.mxu0 %v523
  %v525 = vpop.f32.mrf.mxu0
  %v526 = vadd.f32 %v423, %v525
  %v527 = vand.u32 %v294, 4294901760
  %528 = vmatmul.f32.gmra.mxu0 %v527
  %v529 = vpop.f32.mrf.mxu0
  %v530 = vadd.f32 %v431, %v529
  %v531 = vand.u32 %v297, 4294901760
  %532 = vmatmul.f32.gmra.mxu0 %v531
  %v533 = vpop.f32.mrf.mxu0
  %v534 = vadd.f32 %v439, %v533
  %v535 = vand.u32 %v300, 4294901760
  %536 = vmatmul.f32.gmra.mxu0 %v535
  %v537 = vpop.f32.mrf.mxu0
  %v538 = vadd.f32 %v447, %v537
  %539 = vdwg.mxu0
  %540 = vmatpush.msra.mxu0 0.0
  %541 = vmatpush.msra.mxu0 0.0
  %542 = vmatpush.msra.mxu0 0.0
  %543 = vmatpush.msra.mxu0 0.0
  %544 = vmatpush.msra.mxu0 0.0
  %545 = vmatpush.msra.mxu0 0.0
  %546 = vmatpush.msra.mxu0 0.0
  %547 = vmatpush.msra.mxu0 0.0
  %548 = vmatpush.msra.mxu0 0.0
  %549 = vmatpush.msra.mxu0 0.0
  %550 = vmatpush.msra.mxu0 0.0
  %551 = vmatpush.msra.mxu0 0.0
  %552 = vmatpush.msra.mxu0 0.0
  %553 = vmatpush.msra.mxu0 0.0
  %v554 = vand.u32 %v252, 4294901760
  %v555 = vsub.f32 %v252, %v554
  %556 = vmatpush.msra.mxu0 %v555
  %v557 = vand.u32 %v251, 4294901760
  %v558 = vsub.f32 %v251, %v557
  %559 = vmatpush.msra.mxu0 %v558
  %v560 = vand.u32 %v255, 4294901760
  %v561 = vsub.f32 %v255, %v560
  %562 = vmatmul.f32.gmra.mxu0 %v561
  %v563 = vpop.f32.mrf.mxu0
  %v564 = vadd.f32 %v478, %v563
  %v565 = vand.u32 %v258, 4294901760
  %v566 = vsub.f32 %v258, %v565
  %567 = vmatmul.f32.gmra.mxu0 %v566
  %v568 = vpop.f32.mrf.mxu0
  %v569 = vadd.f32 %v482, %v568
  %v570 = vand.u32 %v261, 4294901760
  %v571 = vsub.f32 %v261, %v570
  %572 = vmatmul.f32.gmra.mxu0 %v571
  %v573 = vpop.f32.mrf.mxu0
  %v574 = vadd.f32 %v486, %v573
  %v575 = vand.u32 %v264, 4294901760
  %v576 = vsub.f32 %v264, %v575
  %577 = vmatmul.f32.gmra.mxu0 %v576
  %v578 = vpop.f32.mrf.mxu0
  %v579 = vadd.f32 %v490, %v578
  %v580 = vand.u32 %v267, 4294901760
  %v581 = vsub.f32 %v267, %v580
  %582 = vmatmul.f32.gmra.mxu0 %v581
  %v583 = vpop.f32.mrf.mxu0
  %v584 = vadd.f32 %v494, %v583
  %v585 = vand.u32 %v270, 4294901760
  %v586 = vsub.f32 %v270, %v585
  %587 = vmatmul.f32.gmra.mxu0 %v586
  %v588 = vpop.f32.mrf.mxu0
  %v589 = vadd.f32 %v498, %v588
  %v590 = vand.u32 %v273, 4294901760
  %v591 = vsub.f32 %v273, %v590
  %592 = vmatmul.f32.gmra.mxu0 %v591
  %v593 = vpop.f32.mrf.mxu0
  %v594 = vadd.f32 %v502, %v593
  %v595 = vand.u32 %v276, 4294901760
  %v596 = vsub.f32 %v276, %v595
  %597 = vmatmul.f32.gmra.mxu0 %v596
  %v598 = vpop.f32.mrf.mxu0
  %v599 = vadd.f32 %v506, %v598
  %v600 = vand.u32 %v279, 4294901760
  %v601 = vsub.f32 %v279, %v600
  %602 = vmatmul.f32.gmra.mxu0 %v601
  %v603 = vpop.f32.mrf.mxu0
  %v604 = vadd.f32 %v510, %v603
  %v605 = vand.u32 %v282, 4294901760
  %v606 = vsub.f32 %v282, %v605
  %607 = vmatmul.f32.gmra.mxu0 %v606
  %v608 = vpop.f32.mrf.mxu0
  %v609 = vadd.f32 %v514, %v608
  %v610 = vand.u32 %v285, 4294901760
  %v611 = vsub.f32 %v285, %v610
  %612 = vmatmul.f32.gmra.mxu0 %v611
  %v613 = vpop.f32.mrf.mxu0
  %v614 = vadd.f32 %v518, %v613
  %v615 = vand.u32 %v288, 4294901760
  %v616 = vsub.f32 %v288, %v615
  %617 = vmatmul.f32.gmra.mxu0 %v616
  %v618 = vpop.f32.mrf.mxu0
  %v619 = vadd.f32 %v522, %v618
  %v620 = vand.u32 %v291, 4294901760
  %v621 = vsub.f32 %v291, %v620
  %622 = vmatmul.f32.gmra.mxu0 %v621
  %v623 = vpop.f32.mrf.mxu0
  %v624 = vadd.f32 %v526, %v623
  %v625 = vand.u32 %v294, 4294901760
  %v626 = vsub.f32 %v294, %v625
  %627 = vmatmul.f32.gmra.mxu0 %v626
  %v628 = vpop.f32.mrf.mxu0
  %v629 = vadd.f32 %v530, %v628
  %v630 = vand.u32 %v297, 4294901760
  %v631 = vsub.f32 %v297, %v630
  %632 = vmatmul.f32.gmra.mxu0 %v631
  %v633 = vpop.f32.mrf.mxu0
  %v634 = vadd.f32 %v534, %v633
  %v635 = vand.u32 %v300, 4294901760
  %v636 = vsub.f32 %v300, %v635
  %637 = vmatmul.f32.gmra.mxu0 %v636
  %v638 = vpop.f32.mrf.mxu0
  %v639 = vadd.f32 %v538, %v638
  %640 = vdwg.mxu0
  %641 = vmatpush.msra.mxu0 0.0
  %642 = vmatpush.msra.mxu0 0.0
  %643 = vmatpush.msra.mxu0 0.0
  %644 = vmatpush.msra.mxu0 0.0
  %645 = vmatpush.msra.mxu0 0.0
  %646 = vmatpush.msra.mxu0 0.0
  %647 = vmatpush.msra.mxu0 0.0
  %648 = vmatpush.msra.mxu0 0.0
  %649 = vmatpush.msra.mxu0 0.0
  %650 = vmatpush.msra.mxu0 0.0
  %651 = vmatpush.msra.mxu0 0.0
  %652 = vmatpush.msra.mxu0 0.0
  %653 = vmatpush.msra.mxu0 0.0
  %654 = vmatpush.msra.mxu0 0.0
  %v655 = vand.u32 %v252, 4294901760
  %656 = vmatpush.msra.mxu0 %v655
  %v657 = vand.u32 %v251, 4294901760
  %658 = vmatpush.msra.mxu0 %v657
  %v659 = vand.u32 %v255, 4294901760
  %v660 = vsub.f32 %v255, %v659
  %v661 = vand.u32 %v660, 4294901760
  %662 = vmatmul.f32.gmra.mxu0 %v661
  %v663 = vpop.f32.mrf.mxu0
  %v664 = vadd.f32 %v564, %v663
  %v665 = vand.u32 %v258, 4294901760
  %v666 = vsub.f32 %v258, %v665
  %v667 = vand.u32 %v666, 4294901760
  %668 = vmatmul.f32.gmra.mxu0 %v667
  %v669 = vpop.f32.mrf.mxu0
  %v670 = vadd.f32 %v569, %v669
  %v671 = vand.u32 %v261, 4294901760
  %v672 = vsub.f32 %v261, %v671
  %v673 = vand.u32 %v672, 4294901760
  %674 = vmatmul.f32.gmra.mxu0 %v673
  %v675 = vpop.f32.mrf.mxu0
  %v676 = vadd.f32 %v574, %v675
  %v677 = vand.u32 %v264, 4294901760
  %v678 = vsub.f32 %v264, %v677
  %v679 = vand.u32 %v678, 4294901760
  %680 = vmatmul.f32.gmra.mxu0 %v679
  %v681 = vpop.f32.mrf.mxu0
  %v682 = vadd.f32 %v579, %v681
  %v683 = vand.u32 %v267, 4294901760
  %v684 = vsub.f32 %v267, %v683
  %v685 = vand.u32 %v684, 4294901760
  %686 = vmatmul.f32.gmra.mxu0 %v685
  %v687 = vpop.f32.mrf.mxu0
  %v688 = vadd.f32 %v584, %v687
  %v689 = vand.u32 %v270, 4294901760
  %v690 = vsub.f32 %v270, %v689
  %v691 = vand.u32 %v690, 4294901760
  %692 = vmatmul.f32.gmra.mxu0 %v691
  %v693 = vpop.f32.mrf.mxu0
  %v694 = vadd.f32 %v589, %v693
  %v695 = vand.u32 %v273, 4294901760
  %v696 = vsub.f32 %v273, %v695
  %v697 = vand.u32 %v696, 4294901760
  %698 = vmatmul.f32.gmra.mxu0 %v697
  %v699 = vpop.f32.mrf.mxu0
  %v700 = vadd.f32 %v594, %v699
  %v701 = vand.u32 %v276, 4294901760
  %v702 = vsub.f32 %v276, %v701
  %v703 = vand.u32 %v702, 4294901760
  %704 = vmatmul.f32.gmra.mxu0 %v703
  %v705 = vpop.f32.mrf.mxu0
  %v706 = vadd.f32 %v599, %v705
  %v707 = vand.u32 %v279, 4294901760
  %v708 = vsub.f32 %v279, %v707
  %v709 = vand.u32 %v708, 4294901760
  %710 = vmatmul.f32.gmra.mxu0 %v709
  %v711 = vpop.f32.mrf.mxu0
  %v712 = vadd.f32 %v604, %v711
  %v713 = vand.u32 %v282, 4294901760
  %v714 = vsub.f32 %v282, %v713
  %v715 = vand.u32 %v714, 4294901760
  %716 = vmatmul.f32.gmra.mxu0 %v715
  %v717 = vpop.f32.mrf.mxu0
  %v718 = vadd.f32 %v609, %v717
  %v719 = vand.u32 %v285, 4294901760
  %v720 = vsub.f32 %v285, %v719
  %v721 = vand.u32 %v720, 4294901760
  %722 = vmatmul.f32.gmra.mxu0 %v721
  %v723 = vpop.f32.mrf.mxu0
  %v724 = vadd.f32 %v614, %v723
  %v725 = vand.u32 %v288, 4294901760
  %v726 = vsub.f32 %v288, %v725
  %v727 = vand.u32 %v726, 4294901760
  %728 = vmatmul.f32.gmra.mxu0 %v727
  %v729 = vpop.f32.mrf.mxu0
  %v730 = vadd.f32 %v619, %v729
  %v731 = vand.u32 %v291, 4294901760
  %v732 = vsub.f32 %v291, %v731
  %v733 = vand.u32 %v732, 4294901760
  %734 = vmatmul.f32.gmra.mxu0 %v733
  %v735 = vpop.f32.mrf.mxu0
  %v736 = vadd.f32 %v624, %v735
  %v737 = vand.u32 %v294, 4294901760
  %v738 = vsub.f32 %v294, %v737
  %v739 = vand.u32 %v738, 4294901760
  %740 = vmatmul.f32.gmra.mxu0 %v739
  %v741 = vpop.f32.mrf.mxu0
  %v742 = vadd.f32 %v629, %v741
  %v743 = vand.u32 %v297, 4294901760
  %v744 = vsub.f32 %v297, %v743
  %v745 = vand.u32 %v744, 4294901760
  %746 = vmatmul.f32.gmra.mxu0 %v745
  %v747 = vpop.f32.mrf.mxu0
  %v748 = vadd.f32 %v634, %v747
  %v749 = vand.u32 %v300, 4294901760
  %v750 = vsub.f32 %v300, %v749
  %v751 = vand.u32 %v750, 4294901760
  %752 = vmatmul.f32.gmra.mxu0 %v751
  %v753 = vpop.f32.mrf.mxu0
  %v754 = vadd.f32 %v639, %v753
  %755 = vdwg.mxu0
  %756 = vmatpush.msra.mxu0 0.0
  %757 = vmatpush.msra.mxu0 0.0
  %758 = vmatpush.msra.mxu0 0.0
  %759 = vmatpush.msra.mxu0 0.0
  %760 = vmatpush.msra.mxu0 0.0
  %761 = vmatpush.msra.mxu0 0.0
  %762 = vmatpush.msra.mxu0 0.0
  %763 = vmatpush.msra.mxu0 0.0
  %764 = vmatpush.msra.mxu0 0.0
  %765 = vmatpush.msra.mxu0 0.0
  %766 = vmatpush.msra.mxu0 0.0
  %767 = vmatpush.msra.mxu0 0.0
  %768 = vmatpush.msra.mxu0 0.0
  %769 = vmatpush.msra.mxu0 0.0
  %v770 = vand.u32 %v252, 4294901760
  %v771 = vsub.f32 %v252, %v770
  %v772 = vand.u32 %v771, 4294901760
  %773 = vmatpush.msra.mxu0 %v772
  %v774 = vand.u32 %v251, 4294901760
  %v775 = vsub.f32 %v251, %v774
  %v776 = vand.u32 %v775, 4294901760
  %777 = vmatpush.msra.mxu0 %v776
  %v778 = vand.u32 %v255, 4294901760
  %779 = vmatmul.f32.gmra.mxu0 %v778
  %v780 = vpop.f32.mrf.mxu0
  %v781 = vadd.f32 %v664, %v780
  %v782 = vand.u32 %v258, 4294901760
  %783 = vmatmul.f32.gmra.mxu0 %v782
  %v784 = vpop.f32.mrf.mxu0
  %v785 = vadd.f32 %v670, %v784
  %v786 = vand.u32 %v261, 4294901760
  %787 = vmatmul.f32.gmra.mxu0 %v786
  %v788 = vpop.f32.mrf.mxu0
  %v789 = vadd.f32 %v676, %v788
  %v790 = vand.u32 %v264, 4294901760
  %791 = vmatmul.f32.gmra.mxu0 %v790
  %v792 = vpop.f32.mrf.mxu0
  %v793 = vadd.f32 %v682, %v792
  %v794 = vand.u32 %v267, 4294901760
  %795 = vmatmul.f32.gmra.mxu0 %v794
  %v796 = vpop.f32.mrf.mxu0
  %v797 = vadd.f32 %v688, %v796
  %v798 = vand.u32 %v270, 4294901760
  %799 = vmatmul.f32.gmra.mxu0 %v798
  %v800 = vpop.f32.mrf.mxu0
  %v801 = vadd.f32 %v694, %v800
  %v802 = vand.u32 %v273, 4294901760
  %803 = vmatmul.f32.gmra.mxu0 %v802
  %v804 = vpop.f32.mrf.mxu0
  %v805 = vadd.f32 %v700, %v804
  %v806 = vand.u32 %v276, 4294901760
  %807 = vmatmul.f32.gmra.mxu0 %v806
  %v808 = vpop.f32.mrf.mxu0
  %v809 = vadd.f32 %v706, %v808
  %v810 = vand.u32 %v279, 4294901760
  %811 = vmatmul.f32.gmra.mxu0 %v810
  %v812 = vpop.f32.mrf.mxu0
  %v813 = vadd.f32 %v712, %v812
  %v814 = vand.u32 %v282, 4294901760
  %815 = vmatmul.f32.gmra.mxu0 %v814
  %v816 = vpop.f32.mrf.mxu0
  %v817 = vadd.f32 %v718, %v816
  %v818 = vand.u32 %v285, 4294901760
  %819 = vmatmul.f32.gmra.mxu0 %v818
  %v820 = vpop.f32.mrf.mxu0
  %v821 = vadd.f32 %v724, %v820
  %v822 = vand.u32 %v288, 4294901760
  %823 = vmatmul.f32.gmra.mxu0 %v822
  %v824 = vpop.f32.mrf.mxu0
  %v825 = vadd.f32 %v730, %v824
  %v826 = vand.u32 %v291, 4294901760
  %827 = vmatmul.f32.gmra.mxu0 %v826
  %v828 = vpop.f32.mrf.mxu0
  %v829 = vadd.f32 %v736, %v828
  %v830 = vand.u32 %v294, 4294901760
  %831 = vmatmul.f32.gmra.mxu0 %v830
  %v832 = vpop.f32.mrf.mxu0
  %v833 = vadd.f32 %v742, %v832
  %v834 = vand.u32 %v297, 4294901760
  %835 = vmatmul.f32.gmra.mxu0 %v834
  %v836 = vpop.f32.mrf.mxu0
  %v837 = vadd.f32 %v748, %v836
  %v838 = vand.u32 %v300, 4294901760
  %839 = vmatmul.f32.gmra.mxu0 %v838
  %v840 = vpop.f32.mrf.mxu0
  %v841 = vadd.f32 %v754, %v840
  %842 = vdwg.mxu0
  %843 = vmatpush.msra.mxu0 0.0
  %844 = vmatpush.msra.mxu0 0.0
  %845 = vmatpush.msra.mxu0 0.0
  %846 = vmatpush.msra.mxu0 0.0
  %847 = vmatpush.msra.mxu0 0.0
  %848 = vmatpush.msra.mxu0 0.0
  %849 = vmatpush.msra.mxu0 0.0
  %850 = vmatpush.msra.mxu0 0.0
  %851 = vmatpush.msra.mxu0 0.0
  %852 = vmatpush.msra.mxu0 0.0
  %853 = vmatpush.msra.mxu0 0.0
  %854 = vmatpush.msra.mxu0 0.0
  %855 = vmatpush.msra.mxu0 0.0
  %856 = vmatpush.msra.mxu0 0.0
  %v857 = vand.u32 %v252, 4294901760
  %858 = vmatpush.msra.mxu0 %v857
  %v859 = vand.u32 %v251, 4294901760
  %860 = vmatpush.msra.mxu0 %v859
  %v861 = vand.u32 %v255, 4294901760
  %862 = vmatmul.f32.gmra.mxu0 %v861
  %v863 = vpop.f32.mrf.mxu0
  %v864 = vadd.f32 %v781, %v863
  %v865 = vand.u32 %v258, 4294901760
  %866 = vmatmul.f32.gmra.mxu0 %v865
  %v867 = vpop.f32.mrf.mxu0
  %v868 = vadd.f32 %v785, %v867
  %v869 = vand.u32 %v261, 4294901760
  %870 = vmatmul.f32.gmra.mxu0 %v869
  %v871 = vpop.f32.mrf.mxu0
  %v872 = vadd.f32 %v789, %v871
  %v873 = vand.u32 %v264, 4294901760
  %874 = vmatmul.f32.gmra.mxu0 %v873
  %v875 = vpop.f32.mrf.mxu0
  %v876 = vadd.f32 %v793, %v875
  %v877 = vand.u32 %v267, 4294901760
  %878 = vmatmul.f32.gmra.mxu0 %v877
  %v879 = vpop.f32.mrf.mxu0
  %v880 = vadd.f32 %v797, %v879
  %v881 = vand.u32 %v270, 4294901760
  %882 = vmatmul.f32.gmra.mxu0 %v881
  %v883 = vpop.f32.mrf.mxu0
  %v884 = vadd.f32 %v801, %v883
  %v885 = vand.u32 %v273, 4294901760
  %886 = vmatmul.f32.gmra.mxu0 %v885
  %v887 = vpop.f32.mrf.mxu0
  %v888 = vadd.f32 %v805, %v887
  %v889 = vand.u32 %v276, 4294901760
  %890 = vmatmul.f32.gmra.mxu0 %v889
  %v891 = vpop.f32.mrf.mxu0
  %v892 = vadd.f32 %v809, %v891
  %v893 = vand.u32 %v279, 4294901760
  %894 = vmatmul.f32.gmra.mxu0 %v893
  %v895 = vpop.f32.mrf.mxu0
  %v896 = vadd.f32 %v813, %v895
  %v897 = vand.u32 %v282, 4294901760
  %898 = vmatmul.f32.gmra.mxu0 %v897
  %v899 = vpop.f32.mrf.mxu0
  %v900 = vadd.f32 %v817, %v899
  %v901 = vand.u32 %v285, 4294901760
  %902 = vmatmul.f32.gmra.mxu0 %v901
  %v903 = vpop.f32.mrf.mxu0
  %v904 = vadd.f32 %v821, %v903
  %v905 = vand.u32 %v288, 4294901760
  %906 = vmatmul.f32.gmra.mxu0 %v905
  %v907 = vpop.f32.mrf.mxu0
  %v908 = vadd.f32 %v825, %v907
  %v909 = vand.u32 %v291, 4294901760
  %910 = vmatmul.f32.gmra.mxu0 %v909
  %v911 = vpop.f32.mrf.mxu0
  %v912 = vadd.f32 %v829, %v911
  %v913 = vand.u32 %v294, 4294901760
  %914 = vmatmul.f32.gmra.mxu0 %v913
  %v915 = vpop.f32.mrf.mxu0
  %v916 = vadd.f32 %v833, %v915
  %v917 = vand.u32 %v297, 4294901760
  %918 = vmatmul.f32.gmra.mxu0 %v917
  %v919 = vpop.f32.mrf.mxu0
  %v920 = vadd.f32 %v837, %v919
  %v921 = vand.u32 %v300, 4294901760
  %922 = vmatmul.f32.gmra.mxu0 %v921
  %v923 = vpop.f32.mrf.mxu0
  %v924 = vadd.f32 %v841, %v923
  %925 = vdwg.mxu0
  %vm926 = vcmask 523264
  %v928 = vsel %vm926, %v131, 0
  %v931 = vsel %vm926, %v132, 0
  %v934 = vsel %vm926, %v133, 0
  %v937 = vsel %vm926, %v134, 0
  %v940 = vsel %vm926, %v135, 0
  %v943 = vsel %vm926, %v136, 0
  %v946 = vsel %vm926, %v137, 0
  %v949 = vsel %vm926, %v138, 0
  %v952 = vsel %vm926, %v139, 0
  %v955 = vsel %vm926, %v140, 0
  %v958 = vsel %vm926, %v141, 0
  %v961 = vsel %vm926, %v142, 0
  %v964 = vsel %vm926, %v143, 0
  %v967 = vsel %vm926, %v144, 0
  %v970 = vsel %vm926, %v145, 0
  %v973 = vsel %vm926, %v146, 0
  %975 = vmatpush.msra.mxu0 0.0
  %976 = vmatpush.msra.mxu0 0.0
  %977 = vmatpush.msra.mxu0 0.0
  %978 = vmatpush.msra.mxu0 0.0
  %979 = vmatpush.msra.mxu0 0.0
  %980 = vmatpush.msra.mxu0 0.0
  %981 = vmatpush.msra.mxu0 0.0
  %982 = vmatpush.msra.mxu0 0.0
  %v983 = vand.u32 %v154, 4294901760
  %984 = vmatpush.msra.mxu0 %v983
  %v985 = vand.u32 %v153, 4294901760
  %986 = vmatpush.msra.mxu0 %v985
  %v987 = vand.u32 %v152, 4294901760
  %988 = vmatpush.msra.mxu0 %v987
  %v989 = vand.u32 %v151, 4294901760
  %990 = vmatpush.msra.mxu0 %v989
  %v991 = vand.u32 %v150, 4294901760
  %992 = vmatpush.msra.mxu0 %v991
  %v993 = vand.u32 %v149, 4294901760
  %994 = vmatpush.msra.mxu0 %v993
  %v995 = vand.u32 %v148, 4294901760
  %996 = vmatpush.msra.mxu0 %v995
  %v997 = vand.u32 %v147, 4294901760
  %998 = vmatpush.msra.mxu0 %v997
  %v999 = vand.u32 %v928, 4294901760
  %v1000 = vsub.f32 %v928, %v999
  %v1001 = vand.u32 %v1000, 4294901760
  %v1002 = vsub.f32 %v1000, %v1001
  %v1003 = vand.u32 %v1002, 4294901760
  %1004 = vmatmul.f32.gmra.mxu0 %v1003
  %v1005 = vpop.f32.mrf.mxu0
  %v1006 = vadd.f32 %v864, %v1005
  %v1007 = vand.u32 %v931, 4294901760
  %v1008 = vsub.f32 %v931, %v1007
  %v1009 = vand.u32 %v1008, 4294901760
  %v1010 = vsub.f32 %v1008, %v1009
  %v1011 = vand.u32 %v1010, 4294901760
  %1012 = vmatmul.f32.gmra.mxu0 %v1011
  %v1013 = vpop.f32.mrf.mxu0
  %v1014 = vadd.f32 %v868, %v1013
  %v1015 = vand.u32 %v934, 4294901760
  %v1016 = vsub.f32 %v934, %v1015
  %v1017 = vand.u32 %v1016, 4294901760
  %v1018 = vsub.f32 %v1016, %v1017
  %v1019 = vand.u32 %v1018, 4294901760
  %1020 = vmatmul.f32.gmra.mxu0 %v1019
  %v1021 = vpop.f32.mrf.mxu0
  %v1022 = vadd.f32 %v872, %v1021
  %v1023 = vand.u32 %v937, 4294901760
  %v1024 = vsub.f32 %v937, %v1023
  %v1025 = vand.u32 %v1024, 4294901760
  %v1026 = vsub.f32 %v1024, %v1025
  %v1027 = vand.u32 %v1026, 4294901760
  %1028 = vmatmul.f32.gmra.mxu0 %v1027
  %v1029 = vpop.f32.mrf.mxu0
  %v1030 = vadd.f32 %v876, %v1029
  %v1031 = vand.u32 %v940, 4294901760
  %v1032 = vsub.f32 %v940, %v1031
  %v1033 = vand.u32 %v1032, 4294901760
  %v1034 = vsub.f32 %v1032, %v1033
  %v1035 = vand.u32 %v1034, 4294901760
  %1036 = vmatmul.f32.gmra.mxu0 %v1035
  %v1037 = vpop.f32.mrf.mxu0
  %v1038 = vadd.f32 %v880, %v1037
  %v1039 = vand.u32 %v943, 4294901760
  %v1040 = vsub.f32 %v943, %v1039
  %v1041 = vand.u32 %v1040, 4294901760
  %v1042 = vsub.f32 %v1040, %v1041
  %v1043 = vand.u32 %v1042, 4294901760
  %1044 = vmatmul.f32.gmra.mxu0 %v1043
  %v1045 = vpop.f32.mrf.mxu0
  %v1046 = vadd.f32 %v884, %v1045
  %v1047 = vand.u32 %v946, 4294901760
  %v1048 = vsub.f32 %v946, %v1047
  %v1049 = vand.u32 %v1048, 4294901760
  %v1050 = vsub.f32 %v1048, %v1049
  %v1051 = vand.u32 %v1050, 4294901760
  %1052 = vmatmul.f32.gmra.mxu0 %v1051
  %v1053 = vpop.f32.mrf.mxu0
  %v1054 = vadd.f32 %v888, %v1053
  %v1055 = vand.u32 %v949, 4294901760
  %v1056 = vsub.f32 %v949, %v1055
  %v1057 = vand.u32 %v1056, 4294901760
  %v1058 = vsub.f32 %v1056, %v1057
  %v1059 = vand.u32 %v1058, 4294901760
  %1060 = vmatmul.f32.gmra.mxu0 %v1059
  %v1061 = vpop.f32.mrf.mxu0
  %v1062 = vadd.f32 %v892, %v1061
  %v1063 = vand.u32 %v952, 4294901760
  %v1064 = vsub.f32 %v952, %v1063
  %v1065 = vand.u32 %v1064, 4294901760
  %v1066 = vsub.f32 %v1064, %v1065
  %v1067 = vand.u32 %v1066, 4294901760
  %1068 = vmatmul.f32.gmra.mxu0 %v1067
  %v1069 = vpop.f32.mrf.mxu0
  %v1070 = vadd.f32 %v896, %v1069
  %v1071 = vand.u32 %v955, 4294901760
  %v1072 = vsub.f32 %v955, %v1071
  %v1073 = vand.u32 %v1072, 4294901760
  %v1074 = vsub.f32 %v1072, %v1073
  %v1075 = vand.u32 %v1074, 4294901760
  %1076 = vmatmul.f32.gmra.mxu0 %v1075
  %v1077 = vpop.f32.mrf.mxu0
  %v1078 = vadd.f32 %v900, %v1077
  %v1079 = vand.u32 %v958, 4294901760
  %v1080 = vsub.f32 %v958, %v1079
  %v1081 = vand.u32 %v1080, 4294901760
  %v1082 = vsub.f32 %v1080, %v1081
  %v1083 = vand.u32 %v1082, 4294901760
  %1084 = vmatmul.f32.gmra.mxu0 %v1083
  %v1085 = vpop.f32.mrf.mxu0
  %v1086 = vadd.f32 %v904, %v1085
  %v1087 = vand.u32 %v961, 4294901760
  %v1088 = vsub.f32 %v961, %v1087
  %v1089 = vand.u32 %v1088, 4294901760
  %v1090 = vsub.f32 %v1088, %v1089
  %v1091 = vand.u32 %v1090, 4294901760
  %1092 = vmatmul.f32.gmra.mxu0 %v1091
  %v1093 = vpop.f32.mrf.mxu0
  %v1094 = vadd.f32 %v908, %v1093
  %v1095 = vand.u32 %v964, 4294901760
  %v1096 = vsub.f32 %v964, %v1095
  %v1097 = vand.u32 %v1096, 4294901760
  %v1098 = vsub.f32 %v1096, %v1097
  %v1099 = vand.u32 %v1098, 4294901760
  %1100 = vmatmul.f32.gmra.mxu0 %v1099
  %v1101 = vpop.f32.mrf.mxu0
  %v1102 = vadd.f32 %v912, %v1101
  %v1103 = vand.u32 %v967, 4294901760
  %v1104 = vsub.f32 %v967, %v1103
  %v1105 = vand.u32 %v1104, 4294901760
  %v1106 = vsub.f32 %v1104, %v1105
  %v1107 = vand.u32 %v1106, 4294901760
  %1108 = vmatmul.f32.gmra.mxu0 %v1107
  %v1109 = vpop.f32.mrf.mxu0
  %v1110 = vadd.f32 %v916, %v1109
  %v1111 = vand.u32 %v970, 4294901760
  %v1112 = vsub.f32 %v970, %v1111
  %v1113 = vand.u32 %v1112, 4294901760
  %v1114 = vsub.f32 %v1112, %v1113
  %v1115 = vand.u32 %v1114, 4294901760
  %1116 = vmatmul.f32.gmra.mxu0 %v1115
  %v1117 = vpop.f32.mrf.mxu0
  %v1118 = vadd.f32 %v920, %v1117
  %v1119 = vand.u32 %v973, 4294901760
  %v1120 = vsub.f32 %v973, %v1119
  %v1121 = vand.u32 %v1120, 4294901760
  %v1122 = vsub.f32 %v1120, %v1121
  %v1123 = vand.u32 %v1122, 4294901760
  %1124 = vmatmul.f32.gmra.mxu0 %v1123
  %v1125 = vpop.f32.mrf.mxu0
  %v1126 = vadd.f32 %v924, %v1125
  %1127 = vdwg.mxu0
  %1128 = vmatpush.msra.mxu0 0.0
  %1129 = vmatpush.msra.mxu0 0.0
  %1130 = vmatpush.msra.mxu0 0.0
  %1131 = vmatpush.msra.mxu0 0.0
  %1132 = vmatpush.msra.mxu0 0.0
  %1133 = vmatpush.msra.mxu0 0.0
  %1134 = vmatpush.msra.mxu0 0.0
  %1135 = vmatpush.msra.mxu0 0.0
  %v1136 = vand.u32 %v154, 4294901760
  %v1137 = vsub.f32 %v154, %v1136
  %v1138 = vand.u32 %v1137, 4294901760
  %v1139 = vsub.f32 %v1137, %v1138
  %v1140 = vand.u32 %v1139, 4294901760
  %1141 = vmatpush.msra.mxu0 %v1140
  %v1142 = vand.u32 %v153, 4294901760
  %v1143 = vsub.f32 %v153, %v1142
  %v1144 = vand.u32 %v1143, 4294901760
  %v1145 = vsub.f32 %v1143, %v1144
  %v1146 = vand.u32 %v1145, 4294901760
  %1147 = vmatpush.msra.mxu0 %v1146
  %v1148 = vand.u32 %v152, 4294901760
  %v1149 = vsub.f32 %v152, %v1148
  %v1150 = vand.u32 %v1149, 4294901760
  %v1151 = vsub.f32 %v1149, %v1150
  %v1152 = vand.u32 %v1151, 4294901760
  %1153 = vmatpush.msra.mxu0 %v1152
  %v1154 = vand.u32 %v151, 4294901760
  %v1155 = vsub.f32 %v151, %v1154
  %v1156 = vand.u32 %v1155, 4294901760
  %v1157 = vsub.f32 %v1155, %v1156
  %v1158 = vand.u32 %v1157, 4294901760
  %1159 = vmatpush.msra.mxu0 %v1158
  %v1160 = vand.u32 %v150, 4294901760
  %v1161 = vsub.f32 %v150, %v1160
  %v1162 = vand.u32 %v1161, 4294901760
  %v1163 = vsub.f32 %v1161, %v1162
  %v1164 = vand.u32 %v1163, 4294901760
  %1165 = vmatpush.msra.mxu0 %v1164
  %v1166 = vand.u32 %v149, 4294901760
  %v1167 = vsub.f32 %v149, %v1166
  %v1168 = vand.u32 %v1167, 4294901760
  %v1169 = vsub.f32 %v1167, %v1168
  %v1170 = vand.u32 %v1169, 4294901760
  %1171 = vmatpush.msra.mxu0 %v1170
  %v1172 = vand.u32 %v148, 4294901760
  %v1173 = vsub.f32 %v148, %v1172
  %v1174 = vand.u32 %v1173, 4294901760
  %v1175 = vsub.f32 %v1173, %v1174
  %v1176 = vand.u32 %v1175, 4294901760
  %1177 = vmatpush.msra.mxu0 %v1176
  %v1178 = vand.u32 %v147, 4294901760
  %v1179 = vsub.f32 %v147, %v1178
  %v1180 = vand.u32 %v1179, 4294901760
  %v1181 = vsub.f32 %v1179, %v1180
  %v1182 = vand.u32 %v1181, 4294901760
  %1183 = vmatpush.msra.mxu0 %v1182
  %v1184 = vand.u32 %v928, 4294901760
  %1185 = vmatmul.f32.gmra.mxu0 %v1184
  %v1186 = vpop.f32.mrf.mxu0
  %v1187 = vadd.f32 %v1006, %v1186
  %v1188 = vand.u32 %v931, 4294901760
  %1189 = vmatmul.f32.gmra.mxu0 %v1188
  %v1190 = vpop.f32.mrf.mxu0
  %v1191 = vadd.f32 %v1014, %v1190
  %v1192 = vand.u32 %v934, 4294901760
  %1193 = vmatmul.f32.gmra.mxu0 %v1192
  %v1194 = vpop.f32.mrf.mxu0
  %v1195 = vadd.f32 %v1022, %v1194
  %v1196 = vand.u32 %v937, 4294901760
  %1197 = vmatmul.f32.gmra.mxu0 %v1196
  %v1198 = vpop.f32.mrf.mxu0
  %v1199 = vadd.f32 %v1030, %v1198
  %v1200 = vand.u32 %v940, 4294901760
  %1201 = vmatmul.f32.gmra.mxu0 %v1200
  %v1202 = vpop.f32.mrf.mxu0
  %v1203 = vadd.f32 %v1038, %v1202
  %v1204 = vand.u32 %v943, 4294901760
  %1205 = vmatmul.f32.gmra.mxu0 %v1204
  %v1206 = vpop.f32.mrf.mxu0
  %v1207 = vadd.f32 %v1046, %v1206
  %v1208 = vand.u32 %v946, 4294901760
  %1209 = vmatmul.f32.gmra.mxu0 %v1208
  %v1210 = vpop.f32.mrf.mxu0
  %v1211 = vadd.f32 %v1054, %v1210
  %v1212 = vand.u32 %v949, 4294901760
  %1213 = vmatmul.f32.gmra.mxu0 %v1212
  %v1214 = vpop.f32.mrf.mxu0
  %v1215 = vadd.f32 %v1062, %v1214
  %v1216 = vand.u32 %v952, 4294901760
  %1217 = vmatmul.f32.gmra.mxu0 %v1216
  %v1218 = vpop.f32.mrf.mxu0
  %v1219 = vadd.f32 %v1070, %v1218
  %v1220 = vand.u32 %v955, 4294901760
  %1221 = vmatmul.f32.gmra.mxu0 %v1220
  %v1222 = vpop.f32.mrf.mxu0
  %v1223 = vadd.f32 %v1078, %v1222
  %v1224 = vand.u32 %v958, 4294901760
  %1225 = vmatmul.f32.gmra.mxu0 %v1224
  %v1226 = vpop.f32.mrf.mxu0
  %v1227 = vadd.f32 %v1086, %v1226
  %v1228 = vand.u32 %v961, 4294901760
  %1229 = vmatmul.f32.gmra.mxu0 %v1228
  %v1230 = vpop.f32.mrf.mxu0
  %v1231 = vadd.f32 %v1094, %v1230
  %v1232 = vand.u32 %v964, 4294901760
  %1233 = vmatmul.f32.gmra.mxu0 %v1232
  %v1234 = vpop.f32.mrf.mxu0
  %v1235 = vadd.f32 %v1102, %v1234
  %v1236 = vand.u32 %v967, 4294901760
  %1237 = vmatmul.f32.gmra.mxu0 %v1236
  %v1238 = vpop.f32.mrf.mxu0
  %v1239 = vadd.f32 %v1110, %v1238
  %v1240 = vand.u32 %v970, 4294901760
  %1241 = vmatmul.f32.gmra.mxu0 %v1240
  %v1242 = vpop.f32.mrf.mxu0
  %v1243 = vadd.f32 %v1118, %v1242
  %v1244 = vand.u32 %v973, 4294901760
  %1245 = vmatmul.f32.gmra.mxu0 %v1244
  %v1246 = vpop.f32.mrf.mxu0
  %v1247 = vadd.f32 %v1126, %v1246
  %1248 = vdwg.mxu0
  %1249 = vmatpush.msra.mxu0 0.0
  %1250 = vmatpush.msra.mxu0 0.0
  %1251 = vmatpush.msra.mxu0 0.0
  %1252 = vmatpush.msra.mxu0 0.0
  %1253 = vmatpush.msra.mxu0 0.0
  %1254 = vmatpush.msra.mxu0 0.0
  %1255 = vmatpush.msra.mxu0 0.0
  %1256 = vmatpush.msra.mxu0 0.0
  %v1257 = vand.u32 %v154, 4294901760
  %v1258 = vsub.f32 %v154, %v1257
  %1259 = vmatpush.msra.mxu0 %v1258
  %v1260 = vand.u32 %v153, 4294901760
  %v1261 = vsub.f32 %v153, %v1260
  %1262 = vmatpush.msra.mxu0 %v1261
  %v1263 = vand.u32 %v152, 4294901760
  %v1264 = vsub.f32 %v152, %v1263
  %1265 = vmatpush.msra.mxu0 %v1264
  %v1266 = vand.u32 %v151, 4294901760
  %v1267 = vsub.f32 %v151, %v1266
  %1268 = vmatpush.msra.mxu0 %v1267
  %v1269 = vand.u32 %v150, 4294901760
  %v1270 = vsub.f32 %v150, %v1269
  %1271 = vmatpush.msra.mxu0 %v1270
  %v1272 = vand.u32 %v149, 4294901760
  %v1273 = vsub.f32 %v149, %v1272
  %1274 = vmatpush.msra.mxu0 %v1273
  %v1275 = vand.u32 %v148, 4294901760
  %v1276 = vsub.f32 %v148, %v1275
  %1277 = vmatpush.msra.mxu0 %v1276
  %v1278 = vand.u32 %v147, 4294901760
  %v1279 = vsub.f32 %v147, %v1278
  %1280 = vmatpush.msra.mxu0 %v1279
  %v1281 = vand.u32 %v928, 4294901760
  %v1282 = vsub.f32 %v928, %v1281
  %1283 = vmatmul.f32.gmra.mxu0 %v1282
  %v1284 = vpop.f32.mrf.mxu0
  %v1285 = vadd.f32 %v1187, %v1284
  %v1286 = vand.u32 %v931, 4294901760
  %v1287 = vsub.f32 %v931, %v1286
  %1288 = vmatmul.f32.gmra.mxu0 %v1287
  %v1289 = vpop.f32.mrf.mxu0
  %v1290 = vadd.f32 %v1191, %v1289
  %v1291 = vand.u32 %v934, 4294901760
  %v1292 = vsub.f32 %v934, %v1291
  %1293 = vmatmul.f32.gmra.mxu0 %v1292
  %v1294 = vpop.f32.mrf.mxu0
  %v1295 = vadd.f32 %v1195, %v1294
  %v1296 = vand.u32 %v937, 4294901760
  %v1297 = vsub.f32 %v937, %v1296
  %1298 = vmatmul.f32.gmra.mxu0 %v1297
  %v1299 = vpop.f32.mrf.mxu0
  %v1300 = vadd.f32 %v1199, %v1299
  %v1301 = vand.u32 %v940, 4294901760
  %v1302 = vsub.f32 %v940, %v1301
  %1303 = vmatmul.f32.gmra.mxu0 %v1302
  %v1304 = vpop.f32.mrf.mxu0
  %v1305 = vadd.f32 %v1203, %v1304
  %v1306 = vand.u32 %v943, 4294901760
  %v1307 = vsub.f32 %v943, %v1306
  %1308 = vmatmul.f32.gmra.mxu0 %v1307
  %v1309 = vpop.f32.mrf.mxu0
  %v1310 = vadd.f32 %v1207, %v1309
  %v1311 = vand.u32 %v946, 4294901760
  %v1312 = vsub.f32 %v946, %v1311
  %1313 = vmatmul.f32.gmra.mxu0 %v1312
  %v1314 = vpop.f32.mrf.mxu0
  %v1315 = vadd.f32 %v1211, %v1314
  %v1316 = vand.u32 %v949, 4294901760
  %v1317 = vsub.f32 %v949, %v1316
  %1318 = vmatmul.f32.gmra.mxu0 %v1317
  %v1319 = vpop.f32.mrf.mxu0
  %v1320 = vadd.f32 %v1215, %v1319
  %v1321 = vand.u32 %v952, 4294901760
  %v1322 = vsub.f32 %v952, %v1321
  %1323 = vmatmul.f32.gmra.mxu0 %v1322
  %v1324 = vpop.f32.mrf.mxu0
  %v1325 = vadd.f32 %v1219, %v1324
  %v1326 = vand.u32 %v955, 4294901760
  %v1327 = vsub.f32 %v955, %v1326
  %1328 = vmatmul.f32.gmra.mxu0 %v1327
  %v1329 = vpop.f32.mrf.mxu0
  %v1330 = vadd.f32 %v1223, %v1329
  %v1331 = vand.u32 %v958, 4294901760
  %v1332 = vsub.f32 %v958, %v1331
  %1333 = vmatmul.f32.gmra.mxu0 %v1332
  %v1334 = vpop.f32.mrf.mxu0
  %v1335 = vadd.f32 %v1227, %v1334
  %v1336 = vand.u32 %v961, 4294901760
  %v1337 = vsub.f32 %v961, %v1336
  %1338 = vmatmul.f32.gmra.mxu0 %v1337
  %v1339 = vpop.f32.mrf.mxu0
  %v1340 = vadd.f32 %v1231, %v1339
  %v1341 = vand.u32 %v964, 4294901760
  %v1342 = vsub.f32 %v964, %v1341
  %1343 = vmatmul.f32.gmra.mxu0 %v1342
  %v1344 = vpop.f32.mrf.mxu0
  %v1345 = vadd.f32 %v1235, %v1344
  %v1346 = vand.u32 %v967, 4294901760
  %v1347 = vsub.f32 %v967, %v1346
  %1348 = vmatmul.f32.gmra.mxu0 %v1347
  %v1349 = vpop.f32.mrf.mxu0
  %v1350 = vadd.f32 %v1239, %v1349
  %v1351 = vand.u32 %v970, 4294901760
  %v1352 = vsub.f32 %v970, %v1351
  %1353 = vmatmul.f32.gmra.mxu0 %v1352
  %v1354 = vpop.f32.mrf.mxu0
  %v1355 = vadd.f32 %v1243, %v1354
  %v1356 = vand.u32 %v973, 4294901760
  %v1357 = vsub.f32 %v973, %v1356
  %1358 = vmatmul.f32.gmra.mxu0 %v1357
  %v1359 = vpop.f32.mrf.mxu0
  %v1360 = vadd.f32 %v1247, %v1359
  %1361 = vdwg.mxu0
  %1362 = vmatpush.msra.mxu0 0.0
  %1363 = vmatpush.msra.mxu0 0.0
  %1364 = vmatpush.msra.mxu0 0.0
  %1365 = vmatpush.msra.mxu0 0.0
  %1366 = vmatpush.msra.mxu0 0.0
  %1367 = vmatpush.msra.mxu0 0.0
  %1368 = vmatpush.msra.mxu0 0.0
  %1369 = vmatpush.msra.mxu0 0.0
  %v1370 = vand.u32 %v154, 4294901760
  %1371 = vmatpush.msra.mxu0 %v1370
  %v1372 = vand.u32 %v153, 4294901760
  %1373 = vmatpush.msra.mxu0 %v1372
  %v1374 = vand.u32 %v152, 4294901760
  %1375 = vmatpush.msra.mxu0 %v1374
  %v1376 = vand.u32 %v151, 4294901760
  %1377 = vmatpush.msra.mxu0 %v1376
  %v1378 = vand.u32 %v150, 4294901760
  %1379 = vmatpush.msra.mxu0 %v1378
  %v1380 = vand.u32 %v149, 4294901760
  %1381 = vmatpush.msra.mxu0 %v1380
  %v1382 = vand.u32 %v148, 4294901760
  %1383 = vmatpush.msra.mxu0 %v1382
  %v1384 = vand.u32 %v147, 4294901760
  %1385 = vmatpush.msra.mxu0 %v1384
  %v1386 = vand.u32 %v928, 4294901760
  %v1387 = vsub.f32 %v928, %v1386
  %v1388 = vand.u32 %v1387, 4294901760
  %1389 = vmatmul.f32.gmra.mxu0 %v1388
  %v1390 = vpop.f32.mrf.mxu0
  %v1391 = vadd.f32 %v1285, %v1390
  %v1392 = vand.u32 %v931, 4294901760
  %v1393 = vsub.f32 %v931, %v1392
  %v1394 = vand.u32 %v1393, 4294901760
  %1395 = vmatmul.f32.gmra.mxu0 %v1394
  %v1396 = vpop.f32.mrf.mxu0
  %v1397 = vadd.f32 %v1290, %v1396
  %v1398 = vand.u32 %v934, 4294901760
  %v1399 = vsub.f32 %v934, %v1398
  %v1400 = vand.u32 %v1399, 4294901760
  %1401 = vmatmul.f32.gmra.mxu0 %v1400
  %v1402 = vpop.f32.mrf.mxu0
  %v1403 = vadd.f32 %v1295, %v1402
  %v1404 = vand.u32 %v937, 4294901760
  %v1405 = vsub.f32 %v937, %v1404
  %v1406 = vand.u32 %v1405, 4294901760
  %1407 = vmatmul.f32.gmra.mxu0 %v1406
  %v1408 = vpop.f32.mrf.mxu0
  %v1409 = vadd.f32 %v1300, %v1408
  %v1410 = vand.u32 %v940, 4294901760
  %v1411 = vsub.f32 %v940, %v1410
  %v1412 = vand.u32 %v1411, 4294901760
  %1413 = vmatmul.f32.gmra.mxu0 %v1412
  %v1414 = vpop.f32.mrf.mxu0
  %v1415 = vadd.f32 %v1305, %v1414
  %v1416 = vand.u32 %v943, 4294901760
  %v1417 = vsub.f32 %v943, %v1416
  %v1418 = vand.u32 %v1417, 4294901760
  %1419 = vmatmul.f32.gmra.mxu0 %v1418
  %v1420 = vpop.f32.mrf.mxu0
  %v1421 = vadd.f32 %v1310, %v1420
  %v1422 = vand.u32 %v946, 4294901760
  %v1423 = vsub.f32 %v946, %v1422
  %v1424 = vand.u32 %v1423, 4294901760
  %1425 = vmatmul.f32.gmra.mxu0 %v1424
  %v1426 = vpop.f32.mrf.mxu0
  %v1427 = vadd.f32 %v1315, %v1426
  %v1428 = vand.u32 %v949, 4294901760
  %v1429 = vsub.f32 %v949, %v1428
  %v1430 = vand.u32 %v1429, 4294901760
  %1431 = vmatmul.f32.gmra.mxu0 %v1430
  %v1432 = vpop.f32.mrf.mxu0
  %v1433 = vadd.f32 %v1320, %v1432
  %v1434 = vand.u32 %v952, 4294901760
  %v1435 = vsub.f32 %v952, %v1434
  %v1436 = vand.u32 %v1435, 4294901760
  %1437 = vmatmul.f32.gmra.mxu0 %v1436
  %v1438 = vpop.f32.mrf.mxu0
  %v1439 = vadd.f32 %v1325, %v1438
  %v1440 = vand.u32 %v955, 4294901760
  %v1441 = vsub.f32 %v955, %v1440
  %v1442 = vand.u32 %v1441, 4294901760
  %1443 = vmatmul.f32.gmra.mxu0 %v1442
  %v1444 = vpop.f32.mrf.mxu0
  %v1445 = vadd.f32 %v1330, %v1444
  %v1446 = vand.u32 %v958, 4294901760
  %v1447 = vsub.f32 %v958, %v1446
  %v1448 = vand.u32 %v1447, 4294901760
  %1449 = vmatmul.f32.gmra.mxu0 %v1448
  %v1450 = vpop.f32.mrf.mxu0
  %v1451 = vadd.f32 %v1335, %v1450
  %v1452 = vand.u32 %v961, 4294901760
  %v1453 = vsub.f32 %v961, %v1452
  %v1454 = vand.u32 %v1453, 4294901760
  %1455 = vmatmul.f32.gmra.mxu0 %v1454
  %v1456 = vpop.f32.mrf.mxu0
  %v1457 = vadd.f32 %v1340, %v1456
  %v1458 = vand.u32 %v964, 4294901760
  %v1459 = vsub.f32 %v964, %v1458
  %v1460 = vand.u32 %v1459, 4294901760
  %1461 = vmatmul.f32.gmra.mxu0 %v1460
  %v1462 = vpop.f32.mrf.mxu0
  %v1463 = vadd.f32 %v1345, %v1462
  %v1464 = vand.u32 %v967, 4294901760
  %v1465 = vsub.f32 %v967, %v1464
  %v1466 = vand.u32 %v1465, 4294901760
  %1467 = vmatmul.f32.gmra.mxu0 %v1466
  %v1468 = vpop.f32.mrf.mxu0
  %v1469 = vadd.f32 %v1350, %v1468
  %v1470 = vand.u32 %v970, 4294901760
  %v1471 = vsub.f32 %v970, %v1470
  %v1472 = vand.u32 %v1471, 4294901760
  %1473 = vmatmul.f32.gmra.mxu0 %v1472
  %v1474 = vpop.f32.mrf.mxu0
  %v1475 = vadd.f32 %v1355, %v1474
  %v1476 = vand.u32 %v973, 4294901760
  %v1477 = vsub.f32 %v973, %v1476
  %v1478 = vand.u32 %v1477, 4294901760
  %1479 = vmatmul.f32.gmra.mxu0 %v1478
  %v1480 = vpop.f32.mrf.mxu0
  %v1481 = vadd.f32 %v1360, %v1480
  %1482 = vdwg.mxu0
  %1483 = vmatpush.msra.mxu0 0.0
  %1484 = vmatpush.msra.mxu0 0.0
  %1485 = vmatpush.msra.mxu0 0.0
  %1486 = vmatpush.msra.mxu0 0.0
  %1487 = vmatpush.msra.mxu0 0.0
  %1488 = vmatpush.msra.mxu0 0.0
  %1489 = vmatpush.msra.mxu0 0.0
  %1490 = vmatpush.msra.mxu0 0.0
  %v1491 = vand.u32 %v154, 4294901760
  %v1492 = vsub.f32 %v154, %v1491
  %v1493 = vand.u32 %v1492, 4294901760
  %1494 = vmatpush.msra.mxu0 %v1493
  %v1495 = vand.u32 %v153, 4294901760
  %v1496 = vsub.f32 %v153, %v1495
  %v1497 = vand.u32 %v1496, 4294901760
  %1498 = vmatpush.msra.mxu0 %v1497
  %v1499 = vand.u32 %v152, 4294901760
  %v1500 = vsub.f32 %v152, %v1499
  %v1501 = vand.u32 %v1500, 4294901760
  %1502 = vmatpush.msra.mxu0 %v1501
  %v1503 = vand.u32 %v151, 4294901760
  %v1504 = vsub.f32 %v151, %v1503
  %v1505 = vand.u32 %v1504, 4294901760
  %1506 = vmatpush.msra.mxu0 %v1505
  %v1507 = vand.u32 %v150, 4294901760
  %v1508 = vsub.f32 %v150, %v1507
  %v1509 = vand.u32 %v1508, 4294901760
  %1510 = vmatpush.msra.mxu0 %v1509
  %v1511 = vand.u32 %v149, 4294901760
  %v1512 = vsub.f32 %v149, %v1511
  %v1513 = vand.u32 %v1512, 4294901760
  %1514 = vmatpush.msra.mxu0 %v1513
  %v1515 = vand.u32 %v148, 4294901760
  %v1516 = vsub.f32 %v148, %v1515
  %v1517 = vand.u32 %v1516, 4294901760
  %1518 = vmatpush.msra.mxu0 %v1517
  %v1519 = vand.u32 %v147, 4294901760
  %v1520 = vsub.f32 %v147, %v1519
  %v1521 = vand.u32 %v1520, 4294901760
  %1522 = vmatpush.msra.mxu0 %v1521
  %v1523 = vand.u32 %v928, 4294901760
  %1524 = vmatmul.f32.gmra.mxu0 %v1523
  %v1525 = vpop.f32.mrf.mxu0
  %v1526 = vadd.f32 %v1391, %v1525
  %v1527 = vand.u32 %v931, 4294901760
  %1528 = vmatmul.f32.gmra.mxu0 %v1527
  %v1529 = vpop.f32.mrf.mxu0
  %v1530 = vadd.f32 %v1397, %v1529
  %v1531 = vand.u32 %v934, 4294901760
  %1532 = vmatmul.f32.gmra.mxu0 %v1531
  %v1533 = vpop.f32.mrf.mxu0
  %v1534 = vadd.f32 %v1403, %v1533
  %v1535 = vand.u32 %v937, 4294901760
  %1536 = vmatmul.f32.gmra.mxu0 %v1535
  %v1537 = vpop.f32.mrf.mxu0
  %v1538 = vadd.f32 %v1409, %v1537
  %v1539 = vand.u32 %v940, 4294901760
  %1540 = vmatmul.f32.gmra.mxu0 %v1539
  %v1541 = vpop.f32.mrf.mxu0
  %v1542 = vadd.f32 %v1415, %v1541
  %v1543 = vand.u32 %v943, 4294901760
  %1544 = vmatmul.f32.gmra.mxu0 %v1543
  %v1545 = vpop.f32.mrf.mxu0
  %v1546 = vadd.f32 %v1421, %v1545
  %v1547 = vand.u32 %v946, 4294901760
  %1548 = vmatmul.f32.gmra.mxu0 %v1547
  %v1549 = vpop.f32.mrf.mxu0
  %v1550 = vadd.f32 %v1427, %v1549
  %v1551 = vand.u32 %v949, 4294901760
  %1552 = vmatmul.f32.gmra.mxu0 %v1551
  %v1553 = vpop.f32.mrf.mxu0
  %v1554 = vadd.f32 %v1433, %v1553
  %v1555 = vand.u32 %v952, 4294901760
  %1556 = vmatmul.f32.gmra.mxu0 %v1555
  %v1557 = vpop.f32.mrf.mxu0
  %v1558 = vadd.f32 %v1439, %v1557
  %v1559 = vand.u32 %v955, 4294901760
  %1560 = vmatmul.f32.gmra.mxu0 %v1559
  %v1561 = vpop.f32.mrf.mxu0
  %v1562 = vadd.f32 %v1445, %v1561
  %v1563 = vand.u32 %v958, 4294901760
  %1564 = vmatmul.f32.gmra.mxu0 %v1563
  %v1565 = vpop.f32.mrf.mxu0
  %v1566 = vadd.f32 %v1451, %v1565
  %v1567 = vand.u32 %v961, 4294901760
  %1568 = vmatmul.f32.gmra.mxu0 %v1567
  %v1569 = vpop.f32.mrf.mxu0
  %v1570 = vadd.f32 %v1457, %v1569
  %v1571 = vand.u32 %v964, 4294901760
  %1572 = vmatmul.f32.gmra.mxu0 %v1571
  %v1573 = vpop.f32.mrf.mxu0
  %v1574 = vadd.f32 %v1463, %v1573
  %v1575 = vand.u32 %v967, 4294901760
  %1576 = vmatmul.f32.gmra.mxu0 %v1575
  %v1577 = vpop.f32.mrf.mxu0
  %v1578 = vadd.f32 %v1469, %v1577
  %v1579 = vand.u32 %v970, 4294901760
  %1580 = vmatmul.f32.gmra.mxu0 %v1579
  %v1581 = vpop.f32.mrf.mxu0
  %v1582 = vadd.f32 %v1475, %v1581
  %v1583 = vand.u32 %v973, 4294901760
  %1584 = vmatmul.f32.gmra.mxu0 %v1583
  %v1585 = vpop.f32.mrf.mxu0
  %v1586 = vadd.f32 %v1481, %v1585
  %1587 = vdwg.mxu0
  %1588 = vmatpush.msra.mxu0 0.0
  %1589 = vmatpush.msra.mxu0 0.0
  %1590 = vmatpush.msra.mxu0 0.0
  %1591 = vmatpush.msra.mxu0 0.0
  %1592 = vmatpush.msra.mxu0 0.0
  %1593 = vmatpush.msra.mxu0 0.0
  %1594 = vmatpush.msra.mxu0 0.0
  %1595 = vmatpush.msra.mxu0 0.0
  %v1596 = vand.u32 %v154, 4294901760
  %1597 = vmatpush.msra.mxu0 %v1596
  %v1598 = vand.u32 %v153, 4294901760
  %1599 = vmatpush.msra.mxu0 %v1598
  %v1600 = vand.u32 %v152, 4294901760
  %1601 = vmatpush.msra.mxu0 %v1600
  %v1602 = vand.u32 %v151, 4294901760
  %1603 = vmatpush.msra.mxu0 %v1602
  %v1604 = vand.u32 %v150, 4294901760
  %1605 = vmatpush.msra.mxu0 %v1604
  %v1606 = vand.u32 %v149, 4294901760
  %1607 = vmatpush.msra.mxu0 %v1606
  %v1608 = vand.u32 %v148, 4294901760
  %1609 = vmatpush.msra.mxu0 %v1608
  %v1610 = vand.u32 %v147, 4294901760
  %1611 = vmatpush.msra.mxu0 %v1610
  %v1612 = vand.u32 %v928, 4294901760
  %1613 = vmatmul.f32.gmra.mxu0 %v1612
  %v1614 = vpop.f32.mrf.mxu0
  %v1615 = vadd.f32 %v1526, %v1614
  %v1616 = vand.u32 %v931, 4294901760
  %1617 = vmatmul.f32.gmra.mxu0 %v1616
  %v1618 = vpop.f32.mrf.mxu0
  %v1619 = vadd.f32 %v1530, %v1618
  %v1620 = vand.u32 %v934, 4294901760
  %1621 = vmatmul.f32.gmra.mxu0 %v1620
  %v1622 = vpop.f32.mrf.mxu0
  %v1623 = vadd.f32 %v1534, %v1622
  %v1624 = vand.u32 %v937, 4294901760
  %1625 = vmatmul.f32.gmra.mxu0 %v1624
  %v1626 = vpop.f32.mrf.mxu0
  %v1627 = vadd.f32 %v1538, %v1626
  %v1628 = vand.u32 %v940, 4294901760
  %1629 = vmatmul.f32.gmra.mxu0 %v1628
  %v1630 = vpop.f32.mrf.mxu0
  %v1631 = vadd.f32 %v1542, %v1630
  %v1632 = vand.u32 %v943, 4294901760
  %1633 = vmatmul.f32.gmra.mxu0 %v1632
  %v1634 = vpop.f32.mrf.mxu0
  %v1635 = vadd.f32 %v1546, %v1634
  %v1636 = vand.u32 %v946, 4294901760
  %1637 = vmatmul.f32.gmra.mxu0 %v1636
  %v1638 = vpop.f32.mrf.mxu0
  %v1639 = vadd.f32 %v1550, %v1638
  %v1640 = vand.u32 %v949, 4294901760
  %1641 = vmatmul.f32.gmra.mxu0 %v1640
  %v1642 = vpop.f32.mrf.mxu0
  %v1643 = vadd.f32 %v1554, %v1642
  %v1644 = vand.u32 %v952, 4294901760
  %1645 = vmatmul.f32.gmra.mxu0 %v1644
  %v1646 = vpop.f32.mrf.mxu0
  %v1647 = vadd.f32 %v1558, %v1646
  %v1648 = vand.u32 %v955, 4294901760
  %1649 = vmatmul.f32.gmra.mxu0 %v1648
  %v1650 = vpop.f32.mrf.mxu0
  %v1651 = vadd.f32 %v1562, %v1650
  %v1652 = vand.u32 %v958, 4294901760
  %1653 = vmatmul.f32.gmra.mxu0 %v1652
  %v1654 = vpop.f32.mrf.mxu0
  %v1655 = vadd.f32 %v1566, %v1654
  %v1656 = vand.u32 %v961, 4294901760
  %1657 = vmatmul.f32.gmra.mxu0 %v1656
  %v1658 = vpop.f32.mrf.mxu0
  %v1659 = vadd.f32 %v1570, %v1658
  %v1660 = vand.u32 %v964, 4294901760
  %1661 = vmatmul.f32.gmra.mxu0 %v1660
  %v1662 = vpop.f32.mrf.mxu0
  %v1663 = vadd.f32 %v1574, %v1662
  %v1664 = vand.u32 %v967, 4294901760
  %1665 = vmatmul.f32.gmra.mxu0 %v1664
  %v1666 = vpop.f32.mrf.mxu0
  %v1667 = vadd.f32 %v1578, %v1666
  %v1668 = vand.u32 %v970, 4294901760
  %1669 = vmatmul.f32.gmra.mxu0 %v1668
  %v1670 = vpop.f32.mrf.mxu0
  %v1671 = vadd.f32 %v1582, %v1670
  %v1672 = vand.u32 %v973, 4294901760
  %1673 = vmatmul.f32.gmra.mxu0 %v1672
  %v1674 = vpop.f32.mrf.mxu0
  %v1675 = vadd.f32 %v1586, %v1674
  %1676 = vdwg.mxu0
  %1677 = vst [vmem:[%s4] sm:$0xff] %v1615
  %1678 = vst [vmem:[%s4 + $0x8] sm:$0xff] %v1619
  %1679 = vst [vmem:[%s4 + $0x10] sm:$0xff] %v1623
  %1680 = vst [vmem:[%s4 + $0x18] sm:$0xff] %v1627
  %1681 = vst [vmem:[%s4 + $0x20] sm:$0xff] %v1631
  %1682 = vst [vmem:[%s4 + $0x28] sm:$0xff] %v1635
  %1683 = vst [vmem:[%s4 + $0x30] sm:$0xff] %v1639
  %1684 = vst [vmem:[%s4 + $0x38] sm:$0xff] %v1643
  %1685 = vst [vmem:[%s4 + $0x40] sm:$0xff] %v1647
  %1686 = vst [vmem:[%s4 + $0x48] sm:$0xff] %v1651
  %1687 = vst [vmem:[%s4 + $0x50] sm:$0xff] %v1655
  %1688 = vst [vmem:[%s4 + $0x58] sm:$0xff] %v1659
  %1689 = vst [vmem:[%s4 + $0x60] sm:$0xff] %v1663
  %1690 = vst [vmem:[%s4 + $0x68] sm:$0xff] %v1667
  %1691 = vst [vmem:[%s4 + $0x70] sm:$0xff] %v1671
  %1692 = vst [vmem:[%s4 + $0x78] sm:$0xff] %v1675
  // Predicated region
  $region18: #{input_layer_forward.1} parent=0 // pred_check
    _
  $region19: #{input_layer_forward.1} parent=0 // pred_check_branch
    %1694 = sbr.rel (0) target = $region21
  $region20: #{input_layer_forward.1} parent=0 // pred_region
    _
  $region21: #{input_layer_forward.1} parent=0 // pred_fallthru
    _
  // Predicated region
  $region22: #{input_layer_forward.1} parent=0 // pred_check
    _
  $region23: #{input_layer_forward.1} parent=0 // pred_check_branch
    %1696 = sbr.rel (0) target = $region25
  $region24: #{input_layer_forward.1} parent=0 // pred_region
    _
  $region25: #{input_layer_forward.1} parent=0 // pred_fallthru
    _

</llo_original>
